<compile_context>
chip_gen: v7x
topology: tpu7x:2x2x1
jax: 0.10.0
libtpu: 0.0.40
codegen_flags: <defaults>
</compile_context>

<pallas_src>
import math
from functools import partial

import jax
import jax.numpy as jnp
from jax import lax
from jax.experimental import pallas as pl
from jax.experimental.pallas import tpu as pltpu

_SQRT_HALF = 0.7071067811865476

# Explicit scoped-VMEM budget: > v5e's 16 MiB default scope, < v7x's 64 MiB
# physical VMEM.  Worst-case per-step footprint at width=64 / tile=8192 with
# double buffering is ~10 MiB, so this leaves ample headroom everywhere.
_VMEM_LIMIT_BYTES = 48 * 1024 * 1024


def _gelu_exact(x):
    # matches torch.nn.functional.gelu default (erf based), computed in f32
    return 0.5 * x * (1.0 + lax.erf(x * _SQRT_HALF))


def _pick_tile(n, target):
    """Lane tile for the flattened spatial dim: multiple of 128, as large as
    `target` (HBM-bound layers want 1-4 MiB blocks), capped at the (rounded
    up) problem size.  Ragged last blocks are handled by Pallas masking."""
    rounded = -(-n // 128) * 128
    return max(128, min(target, rounded))


# ---------------------------------------------------------------------------
# Pallas kernel 1: pointwise linear, transposed layout (lane-dense output)
#   y = [gelu]( W^T @ x + b [+ residual] ),  x: (Cin, N), y: (Cout, N)
# ---------------------------------------------------------------------------
def _make_pointwise_kernel(has_res, use_gelu):
    # x_ref: (Cin, tn), [r_ref: (Cout, tn)], w_ref: (Cout, Cin) bf16,
    # b_ref: (Cout, 1) f32, o_ref: (Cout, tn) -- N on lanes -> dense stores.
    def compute(x, r, w, b):
        # bf16 operands feed the MXU natively; accumulate in f32.
        y = jnp.dot(w, x.astype(w.dtype), preferred_element_type=jnp.float32)
        y = y + b
        if r is not None:
            y = y + r.astype(jnp.float32)
        if use_gelu:
            y = _gelu_exact(y)
        return y

    if has_res:
        def kernel(x_ref, r_ref, w_ref, b_ref, o_ref):
            o_ref[...] = compute(x_ref[...], r_ref[...], w_ref[...],
                                 b_ref[...]).astype(o_ref.dtype)
    else:
        def kernel(x_ref, w_ref, b_ref, o_ref):
            o_ref[...] = compute(x_ref[...], None, w_ref[...],
                                 b_ref[...]).astype(o_ref.dtype)
    return kernel


def pointwise_linear(x, wT, b, residual=None, use_gelu=False,
                     out_dtype=jnp.bfloat16, tile=8192):
    """x: (Cin, N); wT: (Cout, Cin) bf16 (pre-transposed); b: (Cout, 1) f32;
    residual: (Cout, N) or None.  Returns (Cout, N) in `out_dtype`."""
    cin, n = x.shape
    cout = wT.shape[0]
    tn = _pick_tile(n, tile)
    grid = (pl.cdiv(n, tn),)

    args = [x]
    in_specs = [pl.BlockSpec((cin, tn), lambda i: (0, i))]
    if residual is not None:
        args.append(residual)
        in_specs.append(pl.BlockSpec((cout, tn), lambda i: (0, i)))
    args += [wT, b]
    in_specs += [pl.BlockSpec((cout, cin), lambda i: (0, 0)),
                 pl.BlockSpec((cout, 1), lambda i: (0, 0))]

    return pl.pallas_call(
        _make_pointwise_kernel(residual is not None, use_gelu),
        out_shape=jax.ShapeDtypeStruct((cout, n), out_dtype),
        grid=grid,
        in_specs=in_specs,
        out_specs=pl.BlockSpec((cout, tn), lambda i: (0, i)),
        compiler_params=pltpu.CompilerParams(
            dimension_semantics=("parallel",),
            vmem_limit_bytes=_VMEM_LIMIT_BYTES),
    )(*args)


# ---------------------------------------------------------------------------
# Pallas kernel 2: fused projection tail  fc1 -> GELU -> fc2
# ---------------------------------------------------------------------------
def _fc_tail_kernel(x_ref, w1_ref, b1_ref, w2_ref, b2_ref, o_ref):
    # The (hidden, tn) intermediate never leaves VMEM.
    x = x_ref[...].astype(jnp.bfloat16)
    h = jnp.dot(w1_ref[...], x, preferred_element_type=jnp.float32)
    h = _gelu_exact(h + b1_ref[...])
    o = jnp.dot(w2_ref[...], h.astype(jnp.bfloat16),
                preferred_element_type=jnp.float32)
    o_ref[...] = (o + b2_ref[...]).astype(o_ref.dtype)


def fc_tail(x, w1T, b1, w2T, b2, tile=2048):
    """Fused fc1+GELU+fc2.  x: (Cin, N); w1T: (Hd, Cin) bf16; w2T: (P, Hd)
    bf16 -> (P, N) f32.  Smaller tile keeps the (Hd, tn) f32 hidden small."""
    cin, n = x.shape
    hd = w1T.shape[0]
    p = w2T.shape[0]
    tn = _pick_tile(n, tile)
    grid = (pl.cdiv(n, tn),)
    return pl.pallas_call(
        _fc_tail_kernel,
        out_shape=jax.ShapeDtypeStruct((p, n), jnp.float32),
        grid=grid,
        in_specs=[
            pl.BlockSpec((cin, tn), lambda i: (0, i)),
            pl.BlockSpec((hd, cin), lambda i: (0, 0)),
            pl.BlockSpec((hd, 1), lambda i: (0, 0)),
            pl.BlockSpec((p, hd), lambda i: (0, 0)),
            pl.BlockSpec((p, 1), lambda i: (0, 0)),
        ],
        out_specs=pl.BlockSpec((p, tn), lambda i: (0, i)),
        compiler_params=pltpu.CompilerParams(
            dimension_semantics=("parallel",),
            vmem_limit_bytes=_VMEM_LIMIT_BYTES),
    )(x, w1T, b1, w2T, b2)


# ---------------------------------------------------------------------------
# Pallas kernel 3: complex per-mode channel mixing (einsum 'bixy,ioxy->boxy')
# Lane-dense layout: modes M = 2*m1*m2 on the lane axis; the Cin contraction
# is a short pl.loop of VPU FMAs over a (B, Cout, M) tile (weights differ per
# lane, so the MXU cannot be used without tiny per-mode matmuls).
# ---------------------------------------------------------------------------
def _spectral_mix_kernel(xr_ref, xi_ref, wr_ref, wi_ref, or_ref, oi_ref):
    # xr/xi: (Cin, B, M), wr/wi: (Cin, Cout, M), or/oi: (B, Cout, M)
    cin = xr_ref.shape[0]
    or_ref[...] = jnp.zeros_like(or_ref)
    oi_ref[...] = jnp.zeros_like(oi_ref)

    @pl.loop(0, cin)
    def _(ci):
        xr = xr_ref[ci][:, None, :]          # (B, 1, M)
        xi = xi_ref[ci][:, None, :]
        wr = wr_ref[ci][None, :, :]          # (1, Cout, M)
        wi = wi_ref[ci][None, :, :]
        or_ref[...] += xr * wr - xi * wi     # (B, Cout, M) lane-dense FMAs
        oi_ref[...] += xr * wi + xi * wr


def spectral_mix(xr, xi, wr, wi):
    """xr, xi: (Cin, B, M) f32; wr, wi: (Cin, Cout, M) f32
    -> (B, Cout, M) real, imag (f32)."""
    cin, b, m = xr.shape
    cout = wr.shape[1]

    def full(shape):
        return pl.BlockSpec(shape, lambda i: (0, 0, 0))

    return pl.pallas_call(
        _spectral_mix_kernel,
        out_shape=(jax.ShapeDtypeStruct((b, cout, m), jnp.float32),
                   jax.ShapeDtypeStruct((b, cout, m), jnp.float32)),
        grid=(1,),
        in_specs=[full((cin, b, m)), full((cin, b, m)),
                  full((cin, cout, m)), full((cin, cout, m))],
        out_specs=(full((b, cout, m)), full((b, cout, m))),
        compiler_params=pltpu.CompilerParams(
            dimension_semantics=("arbitrary",),
            vmem_limit_bytes=_VMEM_LIMIT_BYTES),
    )(xr, xi, wr, wi)


# ---------------------------------------------------------------------------
# SpectralConv2d_fast equivalent (channel-major layout)
# ---------------------------------------------------------------------------
def spectral_conv2d(x, wr, wi, m1, m2):
    """x: (Cin, B, Hp, Wp) (bf16 or f32) -> (Cout, B, Hp, Wp) f32.
    wr, wi: (Cin, Cout, 2*m1*m2) pre-stacked spectral weights."""
    c, b, hp, wp = x.shape
    cout = wr.shape[1]
    mm = 2 * m1 * m2

    # TODO(synk): FFT / inverse FFT have no Pallas primitive; jnp.fft is used.
    x_ft = jnp.fft.rfft2(x.astype(jnp.float32), axes=(-2, -1))   # (C, B, Hp, Wf)
    corners = jnp.stack([x_ft[:, :, :m1, :m2],                   # -> weights1
                         x_ft[:, :, hp - m1:, :m2]], axis=2)     # -> weights2
    xin = corners.reshape(c, b, mm)                              # (Cin, B, M)

    o_r, o_i = spectral_mix(jnp.real(xin), jnp.imag(xin), wr, wi)  # (B, Cout, M)
    out = (o_r + 1j * o_i).astype(jnp.complex64)
    out = jnp.transpose(out.reshape(b, cout, 2, m1, m2), (1, 0, 2, 3, 4))

    wf = wp // 2 + 1
    out_ft = jnp.zeros((cout, b, hp, wf), dtype=jnp.complex64)
    out_ft = out_ft.at[:, :, :m1, :m2].set(out[:, :, 0])
    out_ft = out_ft.at[:, :, hp - m1:, :m2].set(out[:, :, 1])
    return jnp.fft.irfft2(out_ft, s=(hp, wp), axes=(-2, -1))     # f32


# ---------------------------------------------------------------------------
# FNO2d forward
# ---------------------------------------------------------------------------
def fno2d_forward(x, params, modes1, modes2, padding=2):
    """x: (B, initial_step*num_channels, H, W) f32 -> (B, predict, H, W) f32."""
    b, c0, h, w = x.shape
    wT0, b0 = params["fc0"]
    width = wT0.shape[0]

    # single boundary transpose: NCHW -> channel-major (C, B*H*W)
    xc = jnp.transpose(x, (1, 0, 2, 3)).reshape(c0, b * h * w)
    xc = pointwise_linear(xc, wT0, b0)                            # (width, N) bf16
    xcm = xc.reshape(width, b, h, w)

    # F.pad(x, [0, pad, 0, pad]) -> pad W right, H bottom (guarded for pad=0)
    if padding:
        xcm = jnp.pad(xcm, ((0, 0), (0, 0), (0, padding), (0, padding)))
    hp, wp = h + padding, w + padding
    n = b * hp * wp

    for layer in range(4):
        wr, wi = params["spec"][layer]
        x1 = spectral_conv2d(xcm, wr, wi, modes1, modes2)         # (width,B,Hp,Wp) f32
        wwT, wb = params["w"][layer]
        # fused: 1x1 conv + spectral residual + (GELU except after last layer)
        y = pointwise_linear(xcm.reshape(width, n), wwT, wb,
                             residual=x1.reshape(width, n),
                             use_gelu=(layer < 3))                # bf16
        xcm = y.reshape(width, b, hp, wp)

    xcm = xcm[:, :, :h, :w]                                       # crop padding
    w1T, b1 = params["fc1"]
    w2T, b2 = params["fc2"]
    o = fc_tail(xcm.reshape(width, b * h * w), w1T, b1, w2T, b2)  # (P, B*H*W) f32
    predict = w2T.shape[0]
    return jnp.transpose(o.reshape(predict, b, h, w), (1, 0, 2, 3))


# ---------------------------------------------------------------------------
# Deterministic parameter init (shapes follow the PyTorch module __init__)
# ---------------------------------------------------------------------------
def init_params(key, num_channels, initial_step, modes1, modes2, width,
                fc_hidden, predict):
    c0 = initial_step * num_channels
    keys = iter(jax.random.split(key, 48))

    def linear(fan_in, fan_out):
        bound = 1.0 / math.sqrt(fan_in)
        w = jax.random.uniform(next(keys), (fan_in, fan_out), jnp.float32,
                               -bound, bound)
        b = jax.random.uniform(next(keys), (fan_out,), jnp.float32,
                               -bound, bound)
        return w, b

    params = {"fc0": linear(c0, width), "spec": [], "w": []}
    scale = 1.0 / (width * width)
    for _ in range(4):
        spec = tuple(
            scale * jax.random.uniform(next(keys),
                                       (width, width, modes1, modes2),
                                       jnp.float32)
            for _ in range(4)  # w1r, w1i, w2r, w2i
        )
        params["spec"].append(spec)
        params["w"].append(linear(width, width))   # 1x1 conv: (Cin,Cout)+bias
    params["fc1"] = linear(width, fc_hidden)
    params["fc2"] = linear(fc_hidden, predict)
    return params


def prepare_params(raw):
    """One-time layout prep (outside the jitted forward):
      * pointwise weights transposed to (Cout, Cin) and cast to bf16,
      * biases reshaped to (Cout, 1) f32,
      * spectral weights stacked to (Cin, Cout, 2*m1*m2) f32 mode-major."""
    def lin(wb):
        w, b = wb
        return (jnp.asarray(w.T, jnp.bfloat16),
                jnp.asarray(b.reshape(-1, 1), jnp.float32))

    prep = {"fc0": lin(raw["fc0"]),
            "fc1": lin(raw["fc1"]),
            "fc2": lin(raw["fc2"]),
            "w": [lin(wb) for wb in raw["w"]],
            "spec": []}
    for (w1r, w1i, w2r, w2i) in raw["spec"]:
        cin, cout = w1r.shape[:2]
        wr = jnp.stack([w1r, w2r], axis=2).reshape(cin, cout, -1)
        wi = jnp.stack([w1i, w2i], axis=2).reshape(cin, cout, -1)
        prep["spec"].append((jnp.asarray(wr, jnp.float32),
                             jnp.asarray(wi, jnp.float32)))
    return prep


if __name__ == "__main__":
    # small config consistent with the module: initial_step*num_channels input
    # channels, width-channel Fourier layers, 128-hidden projection, 2-px pad.
    B, H, W = 2, 16, 16
    NUM_CHANNELS, INITIAL_STEP = 1, 10
    MODES1 = MODES2 = 4
    WIDTH, FC_HIDDEN, PREDICT = 16, 128, 1

    key = jax.random.PRNGKey(0)
    k_param, k_x = jax.random.split(key)
    raw_params = init_params(k_param, NUM_CHANNELS, INITIAL_STEP,
                             MODES1, MODES2, WIDTH, FC_HIDDEN, PREDICT)
    params = prepare_params(raw_params)   # one-time weight re-layout / bf16 cast
    x = jax.random.normal(k_x, (B, INITIAL_STEP * NUM_CHANNELS, H, W),
                          jnp.float32)

    fwd = jax.jit(partial(fno2d_forward, modes1=MODES1, modes2=MODES2,
                          padding=2))
    out = jax.block_until_ready(fwd(x, params))
    assert out.shape == (B, PREDICT, H, W), out.shape
    assert out.dtype == jnp.float32
    print("KERNEL_OK")
</pallas_src>

<mosaic_0001>
module attributes {stable_mosaic.version = 11 : i64} {
  func.func @kernel(%arg0: i32, %arg1: memref<10x512xf32, #tpu.memory_space<vmem>>, %arg2: memref<16x10xbf16, #tpu.memory_space<vmem>>, %arg3: memref<16x1xf32, #tpu.memory_space<vmem>>, %arg4: memref<16x512xbf16, #tpu.memory_space<vmem>>) attributes {dimension_semantics = [#tpu.dimension_semantics<parallel>], iteration_bounds = array<i64: 1>, scalar_prefetch = 0 : i64, scratch_operands = 0 : i64, tpu.core_type = #tpu.core_type<tc>, window_params = [{transform_indices = @transform_0, window_bounds = array<i64: 10, 512>}, {pipeline_mode = #tpu.pipeline_mode<synchronous>, transform_indices = @transform_1, window_bounds = array<i64: 16, 10>}, {pipeline_mode = #tpu.pipeline_mode<synchronous>, transform_indices = @transform_2, window_bounds = array<i64: 16, 1>}, {transform_indices = @transform_3, window_bounds = array<i64: 16, 512>}]} {
    %c0 = arith.constant 0 : index
    %c0_0 = arith.constant 0 : index
    %0 = vector.load %arg1[%c0, %c0_0] : memref<10x512xf32, #tpu.memory_space<vmem>>, vector<10x512xf32>
    %c0_1 = arith.constant 0 : index
    %c0_2 = arith.constant 0 : index
    %1 = vector.load %arg2[%c0_1, %c0_2] : memref<16x10xbf16, #tpu.memory_space<vmem>>, vector<16x10xbf16>
    %c0_3 = arith.constant 0 : index
    %c0_4 = arith.constant 0 : index
    %2 = vector.load %arg3[%c0_3, %c0_4] : memref<16x1xf32, #tpu.memory_space<vmem>>, vector<16x1xf32>
    %3 = arith.truncf %0 : vector<10x512xf32> to vector<10x512xbf16>
    %cst = arith.constant dense<0.000000e+00> : vector<16x512xf32>
    %4 = tpu.matmul %1, %3, %cst {dimension_numbers = #tpu.dot_dimension_numbers<[1], [0], [0], [1], [0, 0, 1, 1], [], []>} : vector<16x10xbf16>, vector<10x512xbf16>, vector<16x512xf32> -> vector<16x512xf32>
    %5 = vector.broadcast %2 : vector<16x1xf32> to vector<16x512xf32>
    %6 = arith.addf %4, %5 : vector<16x512xf32>
    %7 = arith.truncf %6 : vector<16x512xf32> to vector<16x512xbf16>
    %c0_5 = arith.constant 0 : index
    %c0_6 = arith.constant 0 : index
    %8 = vector.load %arg4[%c0_5, %c0_6] : memref<16x512xbf16, #tpu.memory_space<vmem>>, vector<16x512xbf16>
    tpu.vector_store %arg4[%c0_5, %c0_6], %7 {strides = array<i32>} : memref<16x512xbf16, #tpu.memory_space<vmem>>, vector<16x512xbf16>,
    return
  }
  func.func @transform_0(%arg0: i32) -> (i32, i32) {
    %c0_i32 = arith.constant 0 : i32
    %c0_i32_0 = arith.constant 0 : i32
    return %c0_i32, %arg0 : i32, i32
  }
  func.func @transform_1(%arg0: i32) -> (i32, i32) {
    %c0_i32 = arith.constant 0 : i32
    %c0_i32_0 = arith.constant 0 : i32
    %c0_i32_1 = arith.constant 0 : i32
    return %c0_i32, %c0_i32_0 : i32, i32
  }
  func.func @transform_2(%arg0: i32) -> (i32, i32) {
    %c0_i32 = arith.constant 0 : i32
    %c0_i32_0 = arith.constant 0 : i32
    %c0_i32_1 = arith.constant 0 : i32
    return %c0_i32, %c0_i32_0 : i32, i32
  }
  func.func @transform_3(%arg0: i32) -> (i32, i32) {
    %c0_i32 = arith.constant 0 : i32
    %c0_i32_0 = arith.constant 0 : i32
    return %c0_i32, %arg0 : i32, i32
  }
}

module attributes {stable_mosaic.version = 11 : i64} {
  func.func @_spectral_mix_kernel(%arg0: i32, %arg1: memref<16x2x32xf32, #tpu.memory_space<vmem>>, %arg2: memref<16x2x32xf32, #tpu.memory_space<vmem>>, %arg3: memref<16x16x32xf32, #tpu.memory_space<vmem>>, %arg4: memref<16x16x32xf32, #tpu.memory_space<vmem>>, %arg5: memref<2x16x32xf32, #tpu.memory_space<vmem>>, %arg6: memref<2x16x32xf32, #tpu.memory_space<vmem>>) attributes {dimension_semantics = [#tpu.dimension_semantics<arbitrary>], iteration_bounds = array<i64: 1>, scalar_prefetch = 0 : i64, scratch_operands = 0 : i64, tpu.core_type = #tpu.core_type<tc>, window_params = [{pipeline_mode = #tpu.pipeline_mode<synchronous>, transform_indices = @transform_0, window_bounds = array<i64: 16, 2, 32>}, {pipeline_mode = #tpu.pipeline_mode<synchronous>, transform_indices = @transform_1, window_bounds = array<i64: 16, 2, 32>}, {pipeline_mode = #tpu.pipeline_mode<synchronous>, transform_indices = @transform_2, window_bounds = array<i64: 16, 16, 32>}, {pipeline_mode = #tpu.pipeline_mode<synchronous>, transform_indices = @transform_3, window_bounds = array<i64: 16, 16, 32>}, {pipeline_mode = #tpu.pipeline_mode<synchronous>, transform_indices = @transform_4, window_bounds = array<i64: 2, 16, 32>}, {pipeline_mode = #tpu.pipeline_mode<synchronous>, transform_indices = @transform_5, window_bounds = array<i64: 2, 16, 32>}]} {
    %cst = arith.constant 0.000000e+00 : f32
    %0 = vector.broadcast %cst : f32 to vector<2x16x32xf32>
    %c0 = arith.constant 0 : index
    %c0_0 = arith.constant 0 : index
    %c0_1 = arith.constant 0 : index
    %1 = vector.load %arg5[%c0, %c0_0, %c0_1] : memref<2x16x32xf32, #tpu.memory_space<vmem>>, vector<2x16x32xf32>
    tpu.vector_store %arg5[%c0, %c0_0, %c0_1], %0 {strides = array<i32>} : memref<2x16x32xf32, #tpu.memory_space<vmem>>, vector<2x16x32xf32>,
    %cst_2 = arith.constant 0.000000e+00 : f32
    %2 = vector.broadcast %cst_2 : f32 to vector<2x16x32xf32>
    %c0_3 = arith.constant 0 : index
    %c0_4 = arith.constant 0 : index
    %c0_5 = arith.constant 0 : index
    %3 = vector.load %arg6[%c0_3, %c0_4, %c0_5] : memref<2x16x32xf32, #tpu.memory_space<vmem>>, vector<2x16x32xf32>
    tpu.vector_store %arg6[%c0_3, %c0_4, %c0_5], %2 {strides = array<i32>} : memref<2x16x32xf32, #tpu.memory_space<vmem>>, vector<2x16x32xf32>,
    %c0_i32 = arith.constant 0 : i32
    %c16_i32 = arith.constant 16 : i32
    %4 = arith.addi %c0_i32, %c16_i32 : i32
    %c1_i32 = arith.constant 1 : i32
    scf.for %arg7 = %c0_i32 to %4 step %c1_i32  : i32 {
      %c1_i32_7 = arith.constant 1 : i32
      %5 = arith.muli %arg7, %c1_i32_7 : i32
      %c0_i32_8 = arith.constant 0 : i32
      %6 = arith.addi %c0_i32_8, %5 : i32
      %7 = arith.index_cast %6 : i32 to index
      %c0_9 = arith.constant 0 : index
      %c0_10 = arith.constant 0 : index
      %8 = vector.load %arg1[%7, %c0_9, %c0_10] : memref<16x2x32xf32, #tpu.memory_space<vmem>>, vector<1x2x32xf32>
      %9 = vector.shape_cast %8 : vector<1x2x32xf32> to vector<2x32xf32>
      %10 = vector.shape_cast %9 : vector<2x32xf32> to vector<2x1x32xf32>
      %11 = arith.index_cast %6 : i32 to index
      %c0_11 = arith.constant 0 : index
      %c0_12 = arith.constant 0 : index
      %12 = vector.load %arg2[%11, %c0_11, %c0_12] : memref<16x2x32xf32, #tpu.memory_space<vmem>>, vector<1x2x32xf32>
      %13 = vector.shape_cast %12 : vector<1x2x32xf32> to vector<2x32xf32>
      %14 = vector.shape_cast %13 : vector<2x32xf32> to vector<2x1x32xf32>
      %15 = arith.index_cast %6 : i32 to index
      %c0_13 = arith.constant 0 : index
      %c0_14 = arith.constant 0 : index
      %16 = vector.load %arg3[%15, %c0_13, %c0_14] : memref<16x16x32xf32, #tpu.memory_space<vmem>>, vector<1x16x32xf32>
      %17 = vector.shape_cast %16 : vector<1x16x32xf32> to vector<16x32xf32>
      %18 = vector.shape_cast %17 : vector<16x32xf32> to vector<1x16x32xf32>
      %19 = arith.index_cast %6 : i32 to index
      %c0_15 = arith.constant 0 : index
      %c0_16 = arith.constant 0 : index
      %20 = vector.load %arg4[%19, %c0_15, %c0_16] : memref<16x16x32xf32, #tpu.memory_space<vmem>>, vector<1x16x32xf32>
      %21 = vector.shape_cast %20 : vector<1x16x32xf32> to vector<16x32xf32>
      %22 = vector.shape_cast %21 : vector<16x32xf32> to vector<1x16x32xf32>
      %c0_17 = arith.constant 0 : index
      %c0_18 = arith.constant 0 : index
      %c0_19 = arith.constant 0 : index
      %23 = vector.load %arg5[%c0_17, %c0_18, %c0_19] : memref<2x16x32xf32, #tpu.memory_space<vmem>>, vector<2x16x32xf32>
      %24 = vector.broadcast %10 : vector<2x1x32xf32> to vector<2x16x32xf32>
      %25 = vector.broadcast %18 : vector<1x16x32xf32> to vector<2x16x32xf32>
      %26 = arith.mulf %24, %25 : vector<2x16x32xf32>
      %27 = vector.broadcast %14 : vector<2x1x32xf32> to vector<2x16x32xf32>
      %28 = vector.broadcast %22 : vector<1x16x32xf32> to vector<2x16x32xf32>
      %29 = arith.mulf %27, %28 : vector<2x16x32xf32>
      %30 = arith.subf %26, %29 : vector<2x16x32xf32>
      %31 = arith.addf %23, %30 : vector<2x16x32xf32>
      %c0_20 = arith.constant 0 : index
      %c0_21 = arith.constant 0 : index
      %c0_22 = arith.constant 0 : index
      %32 = vector.load %arg5[%c0_20, %c0_21, %c0_22] : memref<2x16x32xf32, #tpu.memory_space<vmem>>, vector<2x16x32xf32>
      tpu.vector_store %arg5[%c0_20, %c0_21, %c0_22], %31 {strides = array<i32>} : memref<2x16x32xf32, #tpu.memory_space<vmem>>, vector<2x16x32xf32>,
      %c0_23 = arith.constant 0 : index
      %c0_24 = arith.constant 0 : index
      %c0_25 = arith.constant 0 : index
      %33 = vector.load %arg6[%c0_23, %c0_24, %c0_25] : memref<2x16x32xf32, #tpu.memory_space<vmem>>, vector<2x16x32xf32>
      %34 = vector.broadcast %10 : vector<2x1x32xf32> to vector<2x16x32xf32>
      %35 = vector.broadcast %22 : vector<1x16x32xf32> to vector<2x16x32xf32>
      %36 = arith.mulf %34, %35 : vector<2x16x32xf32>
      %37 = vector.broadcast %14 : vector<2x1x32xf32> to vector<2x16x32xf32>
      %38 = vector.broadcast %18 : vector<1x16x32xf32> to vector<2x16x32xf32>
      %39 = arith.mulf %37, %38 : vector<2x16x32xf32>
      %40 = arith.addf %36, %39 : vector<2x16x32xf32>
      %41 = arith.addf %33, %40 : vector<2x16x32xf32>
      %c0_26 = arith.constant 0 : index
      %c0_27 = arith.constant 0 : index
      %c0_28 = arith.constant 0 : index
      %42 = vector.load %arg6[%c0_26, %c0_27, %c0_28] : memref<2x16x32xf32, #tpu.memory_space<vmem>>, vector<2x16x32xf32>
      tpu.vector_store %arg6[%c0_26, %c0_27, %c0_28], %41 {strides = array<i32>} : memref<2x16x32xf32, #tpu.memory_space<vmem>>, vector<2x16x32xf32>,
    }
    %c16_i32_6 = arith.constant 16 : i32
    return
  }
  func.func @transform_0(%arg0: i32) -> (i32, i32, i32) {
    %c0_i32 = arith.constant 0 : i32
    %c0_i32_0 = arith.constant 0 : i32
    %c0_i32_1 = arith.constant 0 : i32
    %c0_i32_2 = arith.constant 0 : i32
    return %c0_i32, %c0_i32_0, %c0_i32_1 : i32, i32, i32
  }
  func.func @transform_1(%arg0: i32) -> (i32, i32, i32) {
    %c0_i32 = arith.constant 0 : i32
    %c0_i32_0 = arith.constant 0 : i32
    %c0_i32_1 = arith.constant 0 : i32
    %c0_i32_2 = arith.constant 0 : i32
    return %c0_i32, %c0_i32_0, %c0_i32_1 : i32, i32, i32
  }
  func.func @transform_2(%arg0: i32) -> (i32, i32, i32) {
    %c0_i32 = arith.constant 0 : i32
    %c0_i32_0 = arith.constant 0 : i32
    %c0_i32_1 = arith.constant 0 : i32
    %c0_i32_2 = arith.constant 0 : i32
    return %c0_i32, %c0_i32_0, %c0_i32_1 : i32, i32, i32
  }
  func.func @transform_3(%arg0: i32) -> (i32, i32, i32) {
    %c0_i32 = arith.constant 0 : i32
    %c0_i32_0 = arith.constant 0 : i32
    %c0_i32_1 = arith.constant 0 : i32
    %c0_i32_2 = arith.constant 0 : i32
    return %c0_i32, %c0_i32_0, %c0_i32_1 : i32, i32, i32
  }
  func.func @transform_4(%arg0: i32) -> (i32, i32, i32) {
    %c0_i32 = arith.constant 0 : i32
    %c0_i32_0 = arith.constant 0 : i32
    %c0_i32_1 = arith.constant 0 : i32
    %c0_i32_2 = arith.constant 0 : i32
    return %c0_i32, %c0_i32_0, %c0_i32_1 : i32, i32, i32
  }
  func.func @transform_5(%arg0: i32) -> (i32, i32, i32) {
    %c0_i32 = arith.constant 0 : i32
    %c0_i32_0 = arith.constant 0 : i32
    %c0_i32_1 = arith.constant 0 : i32
    %c0_i32_2 = arith.constant 0 : i32
    return %c0_i32, %c0_i32_0, %c0_i32_1 : i32, i32, i32
  }
}

module attributes {stable_mosaic.version = 11 : i64} {
  func.func @kernel(%arg0: i32, %arg1: memref<16x768xbf16, #tpu.memory_space<vmem>>, %arg2: memref<16x768xf32, #tpu.memory_space<vmem>>, %arg3: memref<16x16xbf16, #tpu.memory_space<vmem>>, %arg4: memref<16x1xf32, #tpu.memory_space<vmem>>, %arg5: memref<16x768xbf16, #tpu.memory_space<vmem>>) attributes {dimension_semantics = [#tpu.dimension_semantics<parallel>], iteration_bounds = array<i64: 1>, scalar_prefetch = 0 : i64, scratch_operands = 0 : i64, tpu.core_type = #tpu.core_type<tc>, window_params = [{transform_indices = @transform_0, window_bounds = array<i64: 16, 768>}, {transform_indices = @transform_1, window_bounds = array<i64: 16, 768>}, {pipeline_mode = #tpu.pipeline_mode<synchronous>, transform_indices = @transform_2, window_bounds = array<i64: 16, 16>}, {pipeline_mode = #tpu.pipeline_mode<synchronous>, transform_indices = @transform_3, window_bounds = array<i64: 16, 1>}, {transform_indices = @transform_4, window_bounds = array<i64: 16, 768>}]} {
    %c0 = arith.constant 0 : index
    %c0_0 = arith.constant 0 : index
    %0 = vector.load %arg1[%c0, %c0_0] : memref<16x768xbf16, #tpu.memory_space<vmem>>, vector<16x768xbf16>
    %c0_1 = arith.constant 0 : index
    %c0_2 = arith.constant 0 : index
    %1 = vector.load %arg2[%c0_1, %c0_2] : memref<16x768xf32, #tpu.memory_space<vmem>>, vector<16x768xf32>
    %c0_3 = arith.constant 0 : index
    %c0_4 = arith.constant 0 : index
    %2 = vector.load %arg3[%c0_3, %c0_4] : memref<16x16xbf16, #tpu.memory_space<vmem>>, vector<16x16xbf16>
    %c0_5 = arith.constant 0 : index
    %c0_6 = arith.constant 0 : index
    %3 = vector.load %arg4[%c0_5, %c0_6] : memref<16x1xf32, #tpu.memory_space<vmem>>, vector<16x1xf32>
    %cst = arith.constant dense<0.000000e+00> : vector<16x768xf32>
    %4 = tpu.matmul %2, %0, %cst {dimension_numbers = #tpu.dot_dimension_numbers<[1], [0], [0], [1], [0, 0, 1, 1], [], []>} : vector<16x16xbf16>, vector<16x768xbf16>, vector<16x768xf32> -> vector<16x768xf32>
    %5 = vector.broadcast %3 : vector<16x1xf32> to vector<16x768xf32>
    %6 = arith.addf %4, %5 : vector<16x768xf32>
    %7 = arith.addf %6, %1 : vector<16x768xf32>
    %cst_7 = arith.constant 5.000000e-01 : f32
    %8 = vector.broadcast %cst_7 : f32 to vector<16x768xf32>
    %9 = arith.mulf %8, %7 : vector<16x768xf32>
    %cst_8 = arith.constant 0.707106769 : f32
    %10 = vector.broadcast %cst_8 : f32 to vector<16x768xf32>
    %11 = arith.mulf %7, %10 : vector<16x768xf32>
    %12 = math.erf %11 : vector<16x768xf32>
    %cst_9 = arith.constant 1.000000e+00 : f32
    %13 = vector.broadcast %cst_9 : f32 to vector<16x768xf32>
    %14 = arith.addf %13, %12 : vector<16x768xf32>
    %15 = arith.mulf %9, %14 : vector<16x768xf32>
    %16 = arith.truncf %15 : vector<16x768xf32> to vector<16x768xbf16>
    %c0_10 = arith.constant 0 : index
    %c0_11 = arith.constant 0 : index
    %17 = vector.load %arg5[%c0_10, %c0_11] : memref<16x768xbf16, #tpu.memory_space<vmem>>, vector<16x768xbf16>
    tpu.vector_store %arg5[%c0_10, %c0_11], %16 {strides = array<i32>} : memref<16x768xbf16, #tpu.memory_space<vmem>>, vector<16x768xbf16>,
    return
  }
  func.func @transform_0(%arg0: i32) -> (i32, i32) {
    %c0_i32 = arith.constant 0 : i32
    %c0_i32_0 = arith.constant 0 : i32
    return %c0_i32, %arg0 : i32, i32
  }
  func.func @transform_1(%arg0: i32) -> (i32, i32) {
    %c0_i32 = arith.constant 0 : i32
    %c0_i32_0 = arith.constant 0 : i32
    return %c0_i32, %arg0 : i32, i32
  }
  func.func @transform_2(%arg0: i32) -> (i32, i32) {
    %c0_i32 = arith.constant 0 : i32
    %c0_i32_0 = arith.constant 0 : i32
    %c0_i32_1 = arith.constant 0 : i32
    return %c0_i32, %c0_i32_0 : i32, i32
  }
  func.func @transform_3(%arg0: i32) -> (i32, i32) {
    %c0_i32 = arith.constant 0 : i32
    %c0_i32_0 = arith.constant 0 : i32
    %c0_i32_1 = arith.constant 0 : i32
    return %c0_i32, %c0_i32_0 : i32, i32
  }
  func.func @transform_4(%arg0: i32) -> (i32, i32) {
    %c0_i32 = arith.constant 0 : i32
    %c0_i32_0 = arith.constant 0 : i32
    return %c0_i32, %arg0 : i32, i32
  }
}

module attributes {stable_mosaic.version = 11 : i64} {
  func.func @kernel(%arg0: i32, %arg1: memref<16x768xbf16, #tpu.memory_space<vmem>>, %arg2: memref<16x768xf32, #tpu.memory_space<vmem>>, %arg3: memref<16x16xbf16, #tpu.memory_space<vmem>>, %arg4: memref<16x1xf32, #tpu.memory_space<vmem>>, %arg5: memref<16x768xbf16, #tpu.memory_space<vmem>>) attributes {dimension_semantics = [#tpu.dimension_semantics<parallel>], iteration_bounds = array<i64: 1>, scalar_prefetch = 0 : i64, scratch_operands = 0 : i64, tpu.core_type = #tpu.core_type<tc>, window_params = [{transform_indices = @transform_0, window_bounds = array<i64: 16, 768>}, {transform_indices = @transform_1, window_bounds = array<i64: 16, 768>}, {pipeline_mode = #tpu.pipeline_mode<synchronous>, transform_indices = @transform_2, window_bounds = array<i64: 16, 16>}, {pipeline_mode = #tpu.pipeline_mode<synchronous>, transform_indices = @transform_3, window_bounds = array<i64: 16, 1>}, {transform_indices = @transform_4, window_bounds = array<i64: 16, 768>}]} {
    %c0 = arith.constant 0 : index
    %c0_0 = arith.constant 0 : index
    %0 = vector.load %arg1[%c0, %c0_0] : memref<16x768xbf16, #tpu.memory_space<vmem>>, vector<16x768xbf16>
    %c0_1 = arith.constant 0 : index
    %c0_2 = arith.constant 0 : index
    %1 = vector.load %arg2[%c0_1, %c0_2] : memref<16x768xf32, #tpu.memory_space<vmem>>, vector<16x768xf32>
    %c0_3 = arith.constant 0 : index
    %c0_4 = arith.constant 0 : index
    %2 = vector.load %arg3[%c0_3, %c0_4] : memref<16x16xbf16, #tpu.memory_space<vmem>>, vector<16x16xbf16>
    %c0_5 = arith.constant 0 : index
    %c0_6 = arith.constant 0 : index
    %3 = vector.load %arg4[%c0_5, %c0_6] : memref<16x1xf32, #tpu.memory_space<vmem>>, vector<16x1xf32>
    %cst = arith.constant dense<0.000000e+00> : vector<16x768xf32>
    %4 = tpu.matmul %2, %0, %cst {dimension_numbers = #tpu.dot_dimension_numbers<[1], [0], [0], [1], [0, 0, 1, 1], [], []>} : vector<16x16xbf16>, vector<16x768xbf16>, vector<16x768xf32> -> vector<16x768xf32>
    %5 = vector.broadcast %3 : vector<16x1xf32> to vector<16x768xf32>
    %6 = arith.addf %4, %5 : vector<16x768xf32>
    %7 = arith.addf %6, %1 : vector<16x768xf32>
    %8 = arith.truncf %7 : vector<16x768xf32> to vector<16x768xbf16>
    %c0_7 = arith.constant 0 : index
    %c0_8 = arith.constant 0 : index
    %9 = vector.load %arg5[%c0_7, %c0_8] : memref<16x768xbf16, #tpu.memory_space<vmem>>, vector<16x768xbf16>
    tpu.vector_store %arg5[%c0_7, %c0_8], %8 {strides = array<i32>} : memref<16x768xbf16, #tpu.memory_space<vmem>>, vector<16x768xbf16>,
    return
  }
  func.func @transform_0(%arg0: i32) -> (i32, i32) {
    %c0_i32 = arith.constant 0 : i32
    %c0_i32_0 = arith.constant 0 : i32
    return %c0_i32, %arg0 : i32, i32
  }
  func.func @transform_1(%arg0: i32) -> (i32, i32) {
    %c0_i32 = arith.constant 0 : i32
    %c0_i32_0 = arith.constant 0 : i32
    return %c0_i32, %arg0 : i32, i32
  }
  func.func @transform_2(%arg0: i32) -> (i32, i32) {
    %c0_i32 = arith.constant 0 : i32
    %c0_i32_0 = arith.constant 0 : i32
    %c0_i32_1 = arith.constant 0 : i32
    return %c0_i32, %c0_i32_0 : i32, i32
  }
  func.func @transform_3(%arg0: i32) -> (i32, i32) {
    %c0_i32 = arith.constant 0 : i32
    %c0_i32_0 = arith.constant 0 : i32
    %c0_i32_1 = arith.constant 0 : i32
    return %c0_i32, %c0_i32_0 : i32, i32
  }
  func.func @transform_4(%arg0: i32) -> (i32, i32) {
    %c0_i32 = arith.constant 0 : i32
    %c0_i32_0 = arith.constant 0 : i32
    return %c0_i32, %arg0 : i32, i32
  }
}

module attributes {stable_mosaic.version = 11 : i64} {
  func.func @_fc_tail_kernel(%arg0: i32, %arg1: memref<16x512xbf16, #tpu.memory_space<vmem>>, %arg2: memref<128x16xbf16, #tpu.memory_space<vmem>>, %arg3: memref<128x1xf32, #tpu.memory_space<vmem>>, %arg4: memref<1x128xbf16, #tpu.memory_space<vmem>>, %arg5: memref<1x1xf32, #tpu.memory_space<vmem>>, %arg6: memref<1x512xf32, #tpu.memory_space<vmem>>) attributes {dimension_semantics = [#tpu.dimension_semantics<parallel>], iteration_bounds = array<i64: 1>, scalar_prefetch = 0 : i64, scratch_operands = 0 : i64, tpu.core_type = #tpu.core_type<tc>, window_params = [{transform_indices = @transform_0, window_bounds = array<i64: 16, 512>}, {pipeline_mode = #tpu.pipeline_mode<synchronous>, transform_indices = @transform_1, window_bounds = array<i64: 128, 16>}, {pipeline_mode = #tpu.pipeline_mode<synchronous>, transform_indices = @transform_2, window_bounds = array<i64: 128, 1>}, {pipeline_mode = #tpu.pipeline_mode<synchronous>, transform_indices = @transform_3, window_bounds = array<i64: 1, 128>}, {pipeline_mode = #tpu.pipeline_mode<synchronous>, transform_indices = @transform_4, window_bounds = array<i64: 1, 1>}, {transform_indices = @transform_5, window_bounds = array<i64: 1, 512>}]} {
    %c0 = arith.constant 0 : index
    %c0_0 = arith.constant 0 : index
    %0 = vector.load %arg1[%c0, %c0_0] : memref<16x512xbf16, #tpu.memory_space<vmem>>, vector<16x512xbf16>
    %c0_1 = arith.constant 0 : index
    %c0_2 = arith.constant 0 : index
    %1 = vector.load %arg2[%c0_1, %c0_2] : memref<128x16xbf16, #tpu.memory_space<vmem>>, vector<128x16xbf16>
    %cst = arith.constant dense<0.000000e+00> : vector<128x512xf32>
    %2 = tpu.matmul %1, %0, %cst {dimension_numbers = #tpu.dot_dimension_numbers<[1], [0], [0], [1], [0, 0, 1, 1], [], []>} : vector<128x16xbf16>, vector<16x512xbf16>, vector<128x512xf32> -> vector<128x512xf32>
    %c0_3 = arith.constant 0 : index
    %c0_4 = arith.constant 0 : index
    %3 = vector.load %arg3[%c0_3, %c0_4] : memref<128x1xf32, #tpu.memory_space<vmem>>, vector<128x1xf32>
    %4 = vector.broadcast %3 : vector<128x1xf32> to vector<128x512xf32>
    %5 = arith.addf %2, %4 : vector<128x512xf32>
    %cst_5 = arith.constant 5.000000e-01 : f32
    %6 = vector.broadcast %cst_5 : f32 to vector<128x512xf32>
    %7 = arith.mulf %6, %5 : vector<128x512xf32>
    %cst_6 = arith.constant 0.707106769 : f32
    %8 = vector.broadcast %cst_6 : f32 to vector<128x512xf32>
    %9 = arith.mulf %5, %8 : vector<128x512xf32>
    %10 = math.erf %9 : vector<128x512xf32>
    %cst_7 = arith.constant 1.000000e+00 : f32
    %11 = vector.broadcast %cst_7 : f32 to vector<128x512xf32>
    %12 = arith.addf %11, %10 : vector<128x512xf32>
    %13 = arith.mulf %7, %12 : vector<128x512xf32>
    %c0_8 = arith.constant 0 : index
    %c0_9 = arith.constant 0 : index
    %14 = vector.load %arg4[%c0_8, %c0_9] : memref<1x128xbf16, #tpu.memory_space<vmem>>, vector<1x128xbf16>
    %15 = arith.truncf %13 : vector<128x512xf32> to vector<128x512xbf16>
    %cst_10 = arith.constant dense<0.000000e+00> : vector<1x512xf32>
    %16 = tpu.matmul %14, %15, %cst_10 {dimension_numbers = #tpu.dot_dimension_numbers<[1], [0], [0], [1], [0, 0, 1, 1], [], []>} : vector<1x128xbf16>, vector<128x512xbf16>, vector<1x512xf32> -> vector<1x512xf32>
    %c0_11 = arith.constant 0 : index
    %c0_12 = arith.constant 0 : index
    %17 = vector.load %arg5[%c0_11, %c0_12] : memref<1x1xf32, #tpu.memory_space<vmem>>, vector<1x1xf32>
    %18 = vector.broadcast %17 : vector<1x1xf32> to vector<1x512xf32>
    %19 = arith.addf %16, %18 : vector<1x512xf32>
    %c0_13 = arith.constant 0 : index
    %c0_14 = arith.constant 0 : index
    %20 = vector.load %arg6[%c0_13, %c0_14] : memref<1x512xf32, #tpu.memory_space<vmem>>, vector<1x512xf32>
    tpu.vector_store %arg6[%c0_13, %c0_14], %19 {strides = array<i32>} : memref<1x512xf32, #tpu.memory_space<vmem>>, vector<1x512xf32>,
    return
  }
  func.func @transform_0(%arg0: i32) -> (i32, i32) {
    %c0_i32 = arith.constant 0 : i32
    %c0_i32_0 = arith.constant 0 : i32
    return %c0_i32, %arg0 : i32, i32
  }
  func.func @transform_1(%arg0: i32) -> (i32, i32) {
    %c0_i32 = arith.constant 0 : i32
    %c0_i32_0 = arith.constant 0 : i32
    %c0_i32_1 = arith.constant 0 : i32
    return %c0_i32, %c0_i32_0 : i32, i32
  }
  func.func @transform_2(%arg0: i32) -> (i32, i32) {
    %c0_i32 = arith.constant 0 : i32
    %c0_i32_0 = arith.constant 0 : i32
    %c0_i32_1 = arith.constant 0 : i32
    return %c0_i32, %c0_i32_0 : i32, i32
  }
  func.func @transform_3(%arg0: i32) -> (i32, i32) {
    %c0_i32 = arith.constant 0 : i32
    %c0_i32_0 = arith.constant 0 : i32
    %c0_i32_1 = arith.constant 0 : i32
    return %c0_i32, %c0_i32_0 : i32, i32
  }
  func.func @transform_4(%arg0: i32) -> (i32, i32) {
    %c0_i32 = arith.constant 0 : i32
    %c0_i32_0 = arith.constant 0 : i32
    %c0_i32_1 = arith.constant 0 : i32
    return %c0_i32, %c0_i32_0 : i32, i32
  }
  func.func @transform_5(%arg0: i32) -> (i32, i32) {
    %c0_i32 = arith.constant 0 : i32
    %c0_i32_0 = arith.constant 0 : i32
    return %c0_i32, %arg0 : i32, i32
  }
}

</mosaic_0001>

<llo_original>
// kernel: fno2d_forward.10
$region0: #{fno2d_forward.10}
  #allocation0 [shape = 'u32[]', space=smem, size = 0x4, offset = 0x4, fixed_abs, tag = 'smem constant byte address 0x4 - core index']
  #allocation1 [shape = 'u32[144,128]{1,0:T(1,128)}', space=vmem, size = 0x12000, scoped, tag = 'internal scratch']
  %s0 = inlined_call_operand.vmem [shape: f32[10,512], index: 0, kind: input, shape index: {}]
  %s1 = inlined_call_operand.vmem [shape: bf16[16,10], index: 1, kind: input, shape index: {}]
  %s2 = inlined_call_operand.vmem [shape: f32[16,1], index: 2, kind: input, shape index: {}]
  %s3 = inlined_call_operand.vmem [shape: bf16[16,512], index: 3, kind: output, shape index: {}]
  %s4 = sld [smem:[#allocation0]]
  $region22: #{fno2d_forward.10} parent=0
    _
  %s6 = ssub.s32 1, %s4
  %s7 = scalar_select 0, %s6, %s4
  // Predicated region
  $region2: #{fno2d_forward.10} parent=0 // pred_check
    _
  $region3: #{fno2d_forward.10} parent=0 // pred_check_branch
    %9 = sbr.rel (0) target = $region5
  $region4: #{fno2d_forward.10} parent=0 // pred_region
    _
  $region5: #{fno2d_forward.10} parent=0 // pred_fallthru
    _
  // Predicated region
  $region6: #{fno2d_forward.10} parent=0 // pred_check
    _
  $region7: #{fno2d_forward.10} parent=0 // pred_check_branch
    %11 = sbr.rel (0) target = $region9
  $region8: #{fno2d_forward.10} parent=0 // pred_region
    _
  $region9: #{fno2d_forward.10} parent=0 // pred_fallthru
    _
  // Predicated region
  $region10: #{fno2d_forward.10} parent=0 // pred_check
    _
  $region11: #{fno2d_forward.10} parent=0 // pred_check_branch
    %13 = sbr.rel (0) target = $region13
  $region12: #{fno2d_forward.10} parent=0 // pred_region
    _
  $region13: #{fno2d_forward.10} parent=0 // pred_fallthru
    _
  %v15 = vld [vmem:[%s0] sm:$0xff]
  %v16 = vld [vmem:[%s0 + $0x8] sm:$0xff]
  %v17 = vld [vmem:[%s0 + $0x10] sm:$0xff]
  %v18 = vld [vmem:[%s0 + $0x18] sm:$0xff]
  %v19 = vld [vmem:[%s0 + $0x20] sm:$0x3]
  %v20 = vld [vmem:[%s0 + $0x28] sm:$0x3]
  %v21 = vld [vmem:[%s0 + $0x30] sm:$0x3]
  %v22 = vld [vmem:[%s0 + $0x38] sm:$0x3]
  %v23 = vld [vmem:[%s1] sm:$0xf]
  %v24 = vld [vmem:[%s1 + $0x4] sm:$0xf]
  %v25 = vld [vmem:[%s2] sm:$0xff]
  %v26 = vld [vmem:[%s2 + $0x8] sm:$0xff]
  %v27 = vpack.c.bf16 %v19, %v15
  %v28 = vpack.c.bf16 %v20, %v16
  %v29 = vpack.c.bf16 %v21, %v17
  %v30 = vpack.c.bf16 %v22, %v18
  %32 = vset.pattern.permute.xlu0 0
  %33 = vperm.xlu0 %32, %v25
  %v34 = vpop.permute.xlu0 %33
  %37 = vset.pattern.permute.xlu0 0
  %38 = vperm.xlu0 %37, %v26
  %v39 = vpop.permute.xlu0 %38
  %v43 = vunpack.c.l.b16 %v23
  %v44 = vunpack.c.l.b16 %v24
  %v45 = vpack.c.b16 %v44, %v43
  %vm46 = vcmask 80896
  %v48 = vsel %vm46, %v45, 0
  %vm50 = vcmask 1044480
  %v52 = vsel %vm50, %v27, 0
  %v55 = vsel %vm50, %v28, 0
  %v58 = vsel %vm50, %v29, 0
  %v61 = vsel %vm50, %v30, 0
  %63 = vmatprep.subr.bf16.mxu0 %v55
  %64 = vmatpush1.bf16.msra.mxu0 %v52
  %65 = vmatprep.subr.bf16.mxu0 0
  %66 = vmatpush1.bf16.msra.mxu0 0
  %67 = vmatprep.subr.bf16.mxu0 0
  %68 = vmatpush1.bf16.msra.mxu0 0
  %69 = vmatprep.subr.bf16.mxu0 0
  %70 = vmatpush1.bf16.msra.mxu0 0
  %71 = vmatprep.subr.bf16.mxu0 0
  %72 = vmatpush1.bf16.msra.mxu0 0
  %73 = vmatprep.subr.bf16.mxu0 0
  %74 = vmatpush1.bf16.msra.mxu0 0
  %75 = vmatprep.subr.bf16.mxu0 0
  %76 = vmatpush1.bf16.msra.mxu0 0
  %77 = vmatprep.subr.bf16.mxu0 0
  %78 = vmatpush1.bf16.msra.mxu0 0
  %79 = vmatprep.subr.bf16.mxu0 0
  %80 = vmatpush1.bf16.msra.mxu0 0
  %81 = vmatprep.subr.bf16.mxu0 0
  %82 = vmatpush1.bf16.msra.mxu0 0
  %83 = vmatprep.subr.bf16.mxu0 0
  %84 = vmatpush1.bf16.msra.mxu0 0
  %85 = vmatprep.subr.bf16.mxu0 0
  %86 = vmatpush1.bf16.msra.mxu0 0
  %87 = vmatprep.subr.bf16.mxu0 0
  %88 = vmatpush1.bf16.msra.mxu0 0
  %89 = vmatprep.subr.bf16.mxu0 0
  %90 = vmatpush1.bf16.msra.mxu0 0
  %91 = vmatprep.subr.bf16.mxu0 0
  %92 = vmatpush1.bf16.msra.mxu0 0
  %93 = vmatprep.subr.bf16.mxu0 0
  %94 = vmatpush1.bf16.msra.mxu0 0
  %95 = vmatprep.mubr.bf16.mxu0 0
  %96 = vmatmul.mubr.bf16.gmra.mrb[0].mxu0 %v48
  %v97 = vpop.f32.mrb[0].mxu0
  %v98 = vadd.f32 %v34, %v97
  %v99 = vpop.f32.mrb[0].mxu0
  %v100 = vadd.f32 %v34, %v99
  %v101 = vpop.f32.mrb[0].mxu0
  %v102 = vadd.f32 %v39, %v101
  %v103 = vpop.f32.mrb[0].mxu0
  %v104 = vadd.f32 %v39, %v103
  %105 = vdwg.mxu0
  %106 = vmatprep.subr.bf16.mxu0 %v61
  %107 = vmatpush1.bf16.msra.mxu0 %v58
  %108 = vmatprep.subr.bf16.mxu0 0
  %109 = vmatpush1.bf16.msra.mxu0 0
  %110 = vmatprep.subr.bf16.mxu0 0
  %111 = vmatpush1.bf16.msra.mxu0 0
  %112 = vmatprep.subr.bf16.mxu0 0
  %113 = vmatpush1.bf16.msra.mxu0 0
  %114 = vmatprep.subr.bf16.mxu0 0
  %115 = vmatpush1.bf16.msra.mxu0 0
  %116 = vmatprep.subr.bf16.mxu0 0
  %117 = vmatpush1.bf16.msra.mxu0 0
  %118 = vmatprep.subr.bf16.mxu0 0
  %119 = vmatpush1.bf16.msra.mxu0 0
  %120 = vmatprep.subr.bf16.mxu0 0
  %121 = vmatpush1.bf16.msra.mxu0 0
  %122 = vmatprep.subr.bf16.mxu0 0
  %123 = vmatpush1.bf16.msra.mxu0 0
  %124 = vmatprep.subr.bf16.mxu0 0
  %125 = vmatpush1.bf16.msra.mxu0 0
  %126 = vmatprep.subr.bf16.mxu0 0
  %127 = vmatpush1.bf16.msra.mxu0 0
  %128 = vmatprep.subr.bf16.mxu0 0
  %129 = vmatpush1.bf16.msra.mxu0 0
  %130 = vmatprep.subr.bf16.mxu0 0
  %131 = vmatpush1.bf16.msra.mxu0 0
  %132 = vmatprep.subr.bf16.mxu0 0
  %133 = vmatpush1.bf16.msra.mxu0 0
  %134 = vmatprep.subr.bf16.mxu0 0
  %135 = vmatpush1.bf16.msra.mxu0 0
  %136 = vmatprep.subr.bf16.mxu0 0
  %137 = vmatpush1.bf16.msra.mxu0 0
  %138 = vmatprep.mubr.bf16.mxu0 0
  %139 = vmatmul.mubr.bf16.gmra.mrb[0].mxu0 %v48
  %v140 = vpop.f32.mrb[0].mxu0
  %v141 = vadd.f32 %v34, %v140
  %v142 = vpop.f32.mrb[0].mxu0
  %v143 = vadd.f32 %v34, %v142
  %v144 = vpop.f32.mrb[0].mxu0
  %v145 = vadd.f32 %v39, %v144
  %v146 = vpop.f32.mrb[0].mxu0
  %v147 = vadd.f32 %v39, %v146
  %148 = vdwg.mxu0
  %v149 = vpack.c.bf16 %v102, %v98
  %v150 = vpack.c.bf16 %v104, %v100
  %v151 = vpack.c.bf16 %v145, %v141
  %v152 = vpack.c.bf16 %v147, %v143
  %v157 = vunpack.c.l.b16 %v149
  %v158 = vunpack.c.l.b16 %v150
  %v159 = vunpack.c.l.b16 %v151
  %v160 = vunpack.c.l.b16 %v152
  %v161 = vunpack.c.h.b16 %v149
  %v162 = vunpack.c.h.b16 %v150
  %v163 = vunpack.c.h.b16 %v151
  %v164 = vunpack.c.h.b16 %v152
  %v165 = vpack.c.b16 %v158, %v157
  %v166 = vpack.c.b16 %v160, %v159
  %v167 = vpack.c.b16 %v162, %v161
  %v168 = vpack.c.b16 %v164, %v163
  %173 = vst [vmem:[%s3] sm:$0xff] %v165
  %174 = vst [vmem:[%s3 + $0x8] sm:$0xff] %v166
  %175 = vst [vmem:[%s3 + $0x10] sm:$0xff] %v167
  %176 = vst [vmem:[%s3 + $0x18] sm:$0xff] %v168
  // Predicated region
  $region14: #{fno2d_forward.10} parent=0 // pred_check
    _
  $region15: #{fno2d_forward.10} parent=0 // pred_check_branch
    %178 = sbr.rel (0) target = $region17
  $region16: #{fno2d_forward.10} parent=0 // pred_region
    _
  $region17: #{fno2d_forward.10} parent=0 // pred_fallthru
    _
  // Predicated region
  $region18: #{fno2d_forward.10} parent=0 // pred_check
    _
  $region19: #{fno2d_forward.10} parent=0 // pred_check_branch
    %180 = sbr.rel (0) target = $region21
  $region20: #{fno2d_forward.10} parent=0 // pred_region
    _
  $region21: #{fno2d_forward.10} parent=0 // pred_fallthru
    _

// kernel: fno2d_forward.11
$region0: #{fno2d_forward.11}
  #allocation0 [shape = 'u32[]', space=smem, size = 0x4, offset = 0x4, fixed_abs, tag = 'smem constant byte address 0x4 - core index']
  #allocation1 [shape = 'u32[144,128]{1,0:T(1,128)}', space=vmem, size = 0x12000, scoped, tag = 'internal scratch']
  %s0 = inlined_call_operand.vmem [shape: f32[16,2,32], index: 0, kind: input, shape index: {}]
  %s1 = inlined_call_operand.vmem [shape: f32[16,2,32], index: 1, kind: input, shape index: {}]
  %s2 = inlined_call_operand.vmem [shape: f32[16,16,32], index: 2, kind: input, shape index: {}]
  %s3 = inlined_call_operand.vmem [shape: f32[16,16,32], index: 3, kind: input, shape index: {}]
  %s4 = inlined_call_operand.vmem [shape: f32[2,16,32], index: 4, kind: output, shape index: {0}]
  %s5 = inlined_call_operand.vmem [shape: f32[2,16,32], index: 5, kind: output, shape index: {1}]
  %6 = xla_tuple %s4, %s5
  %s7 = sld [smem:[#allocation0]]
  $region41: #{fno2d_forward.11} parent=0
    _
  %s9 = ssub.s32 1, %s7
  %s10 = scalar_select 0, %s9, %s7
  // Predicated region
  $region2: #{fno2d_forward.11} parent=0 // pred_check
    _
  $region3: #{fno2d_forward.11} parent=0 // pred_check_branch
    %12 = sbr.rel (0) target = $region5
  $region4: #{fno2d_forward.11} parent=0 // pred_region
    _
  $region5: #{fno2d_forward.11} parent=0 // pred_fallthru
    _
  // Predicated region
  $region6: #{fno2d_forward.11} parent=0 // pred_check
    _
  $region7: #{fno2d_forward.11} parent=0 // pred_check_branch
    %14 = sbr.rel (0) target = $region9
  $region8: #{fno2d_forward.11} parent=0 // pred_region
    _
  $region9: #{fno2d_forward.11} parent=0 // pred_fallthru
    _
  // Predicated region
  $region10: #{fno2d_forward.11} parent=0 // pred_check
    _
  $region11: #{fno2d_forward.11} parent=0 // pred_check_branch
    %16 = sbr.rel (0) target = $region13
  $region12: #{fno2d_forward.11} parent=0 // pred_region
    _
  $region13: #{fno2d_forward.11} parent=0 // pred_fallthru
    _
  // Predicated region
  $region14: #{fno2d_forward.11} parent=0 // pred_check
    _
  $region15: #{fno2d_forward.11} parent=0 // pred_check_branch
    %18 = sbr.rel (0) target = $region17
  $region16: #{fno2d_forward.11} parent=0 // pred_region
    _
  $region17: #{fno2d_forward.11} parent=0 // pred_fallthru
    _
  %vm19 = vcmask 261120
  %20 = vst.msk [vmem:[%s4] sm:$0xff] %vm19, 0.0
  %21 = vst.msk [vmem:[%s4 + $0x8] sm:$0xff] %vm19, 0.0
  %22 = vst.msk [vmem:[%s4 + $0x10] sm:$0xff] %vm19, 0.0
  %23 = vst.msk [vmem:[%s4 + $0x18] sm:$0xff] %vm19, 0.0
  %24 = vst.msk [vmem:[%s5] sm:$0xff] %vm19, 0.0
  %25 = vst.msk [vmem:[%s5 + $0x8] sm:$0xff] %vm19, 0.0
  %26 = vst.msk [vmem:[%s5 + $0x10] sm:$0xff] %vm19, 0.0
  %27 = vst.msk [vmem:[%s5 + $0x18] sm:$0xff] %vm19, 0.0
  loop: start=0, step=1, limit=16
  $region18: #{fno2d_forward.11} parent=0 // loop_pre_header
    _
  $region19: #{fno2d_forward.11} parent=0 // loop_header
    %s29 = sphi 0, %s33
    %p30 = scmp.ge.s32.totalorder %s29, 16
  $region20: #{fno2d_forward.11} parent=0 // loop_header_branch
    %32 = sbr.rel (%p30) target = $region24
  $region21: #{fno2d_forward.11} parent=0 // loop_body
    %s34 = smul.u32 %s29, 2
    %s35 = scalar_lea.vmem %s0, %s34
    %v36 = vld [vmem:[%s35] sm:$0x3]
    %v39 = vunpack.c.l.s4 1966171168
    %v40 = vunpack.c.0.s8 %v39
    %v41 = vlaneseq
    %v42 = vshrl.u32 %v41, 7
    %v43 = vsub.s32 %v40, %v42
    %v44 = vrot.slane %v36, %v43
    %v45 = vcombine.high %v44, %v44
    %v47 = vunpack.c.l.s4 1966171168
    %v48 = vunpack.c.0.s8 %v47
    %v49 = vlaneseq
    %v50 = vshrl.u32 %v49, 7
    %v51 = vsub.s32 %v48, %v50
    %v52 = vrot.slane %v44, %v51
    %v54 = vunpack.c.l.s4 1966171168
    %v55 = vunpack.c.0.s8 %v54
    %v56 = vlaneseq
    %v57 = vshrl.u32 %v56, 7
    %v58 = vsub.s32 %v55, %v57
    %v59 = vrot.slane %v45, %v58
    %s60 = scalar_lea.vmem %s1, %s34
    %v61 = vld [vmem:[%s60] sm:$0x3]
    %v64 = vunpack.c.l.s4 1966171168
    %v65 = vunpack.c.0.s8 %v64
    %v66 = vlaneseq
    %v67 = vshrl.u32 %v66, 7
    %v68 = vsub.s32 %v65, %v67
    %v69 = vrot.slane %v61, %v68
    %v70 = vcombine.high %v69, %v69
    %v72 = vunpack.c.l.s4 1966171168
    %v73 = vunpack.c.0.s8 %v72
    %v74 = vlaneseq
    %v75 = vshrl.u32 %v74, 7
    %v76 = vsub.s32 %v73, %v75
    %v77 = vrot.slane %v69, %v76
    %v79 = vunpack.c.l.s4 1966171168
    %v80 = vunpack.c.0.s8 %v79
    %v81 = vlaneseq
    %v82 = vshrl.u32 %v81, 7
    %v83 = vsub.s32 %v80, %v82
    %v84 = vrot.slane %v70, %v83
    %s85 = smul.u32 %s29, 16
    %s86 = scalar_lea.vmem %s2, %s85
    %v87 = vld [vmem:[%s86] sm:$0xff]
    %v88 = vld [vmem:[%s86 + $0x8] sm:$0xff]
    %s89 = scalar_lea.vmem %s3, %s85
    %v90 = vld [vmem:[%s89] sm:$0xff]
    %v91 = vld [vmem:[%s89 + $0x8] sm:$0xff]
    %v92 = vld [vmem:[%s4] sm:$0xff]
    %v93 = vld [vmem:[%s4 + $0x8] sm:$0xff]
    %v94 = vld [vmem:[%s4 + $0x10] sm:$0xff]
    %v95 = vld [vmem:[%s4 + $0x18] sm:$0xff]
    %v96 = vlaneseq
    %v97 = vshrl.u32 %v96, 7
    %v98 = vsub.s32 0, %v97
    %v99 = vrot.slane %v52, %v98
    %v100 = vlaneseq
    %v101 = vshrl.u32 %v100, 7
    %v102 = vsub.s32 0, %v101
    %v103 = vrot.slane %v59, %v102
    %v106 = vmul.f32 %v99, %v87
    %v107 = vmul.f32 %v99, %v88
    %v108 = vmul.f32 %v103, %v87
    %v109 = vmul.f32 %v103, %v88
    %v110 = vlaneseq
    %v111 = vshrl.u32 %v110, 7
    %v112 = vsub.s32 0, %v111
    %v113 = vrot.slane %v77, %v112
    %v114 = vlaneseq
    %v115 = vshrl.u32 %v114, 7
    %v116 = vsub.s32 0, %v115
    %v117 = vrot.slane %v84, %v116
    %v120 = vmul.f32 %v113, %v90
    %v121 = vmul.f32 %v113, %v91
    %v122 = vmul.f32 %v117, %v90
    %v123 = vmul.f32 %v117, %v91
    %v124 = vsub.f32 %v106, %v120
    %v125 = vsub.f32 %v107, %v121
    %v126 = vsub.f32 %v108, %v122
    %v127 = vsub.f32 %v109, %v123
    %v128 = vadd.f32 %v92, %v124
    %v129 = vadd.f32 %v93, %v125
    %v130 = vadd.f32 %v94, %v126
    %v131 = vadd.f32 %v95, %v127
    %132 = vst.msk [vmem:[%s4] sm:$0xff] %vm19, %v128
    %133 = vst.msk [vmem:[%s4 + $0x8] sm:$0xff] %vm19, %v129
    %134 = vst.msk [vmem:[%s4 + $0x10] sm:$0xff] %vm19, %v130
    %135 = vst.msk [vmem:[%s4 + $0x18] sm:$0xff] %vm19, %v131
    %v136 = vld [vmem:[%s5] sm:$0xff]
    %v137 = vld [vmem:[%s5 + $0x8] sm:$0xff]
    %v138 = vld [vmem:[%s5 + $0x10] sm:$0xff]
    %v139 = vld [vmem:[%s5 + $0x18] sm:$0xff]
    %v140 = vmul.f32 %v99, %v90
    %v141 = vmul.f32 %v99, %v91
    %v142 = vmul.f32 %v103, %v90
    %v143 = vmul.f32 %v103, %v91
    %v144 = vmul.f32 %v113, %v87
    %v145 = vmul.f32 %v113, %v88
    %v146 = vmul.f32 %v117, %v87
    %v147 = vmul.f32 %v117, %v88
    %v148 = vadd.f32 %v140, %v144
    %v149 = vadd.f32 %v141, %v145
    %v150 = vadd.f32 %v142, %v146
    %v151 = vadd.f32 %v143, %v147
    %v152 = vadd.f32 %v136, %v148
    %v153 = vadd.f32 %v137, %v149
    %v154 = vadd.f32 %v138, %v150
    %v155 = vadd.f32 %v139, %v151
    %156 = vst.msk [vmem:[%s5] sm:$0xff] %vm19, %v152
    %157 = vst.msk [vmem:[%s5 + $0x8] sm:$0xff] %vm19, %v153
    %158 = vst.msk [vmem:[%s5 + $0x10] sm:$0xff] %vm19, %v154
    %159 = vst.msk [vmem:[%s5 + $0x18] sm:$0xff] %vm19, %v155
  $region22: #{fno2d_forward.11} parent=0 // loop_footer
    %s33 = sadd.s32 1, %s29
  $region23: #{fno2d_forward.11} parent=0 // loop_footer_branch
    %28 = sbr.rel target = $region19
  $region24: #{fno2d_forward.11} parent=0 // loop_exit
    _
  // Predicated region
  $region25: #{fno2d_forward.11} parent=0 // pred_check
    _
  $region26: #{fno2d_forward.11} parent=0 // pred_check_branch
    %161 = sbr.rel (0) target = $region28
  $region27: #{fno2d_forward.11} parent=0 // pred_region
    _
  $region28: #{fno2d_forward.11} parent=0 // pred_fallthru
    _
  // Predicated region
  $region29: #{fno2d_forward.11} parent=0 // pred_check
    _
  $region30: #{fno2d_forward.11} parent=0 // pred_check_branch
    %163 = sbr.rel (0) target = $region32
  $region31: #{fno2d_forward.11} parent=0 // pred_region
    _
  $region32: #{fno2d_forward.11} parent=0 // pred_fallthru
    _
  // Predicated region
  $region33: #{fno2d_forward.11} parent=0 // pred_check
    _
  $region34: #{fno2d_forward.11} parent=0 // pred_check_branch
    %165 = sbr.rel (0) target = $region36
  $region35: #{fno2d_forward.11} parent=0 // pred_region
    _
  $region36: #{fno2d_forward.11} parent=0 // pred_fallthru
    _
  // Predicated region
  $region37: #{fno2d_forward.11} parent=0 // pred_check
    _
  $region38: #{fno2d_forward.11} parent=0 // pred_check_branch
    %167 = sbr.rel (0) target = $region40
  $region39: #{fno2d_forward.11} parent=0 // pred_region
    _
  $region40: #{fno2d_forward.11} parent=0 // pred_fallthru
    _

// kernel: reverse.8
$region0: #{reverse.8}
  #allocation0 [shape = 's32[1]{0}', space=sflag, size = 0x4, scoped, tag = 'scoped memory for reverse.8']
  %s0 = inlined_call_operand.vmem [shape: f32[16,2,18,8], index: 0, kind: input, shape index: {}]
  %s1 = inlined_call_operand.vmem [shape: f32[16,2,18,8], index: 1, kind: output, shape index: {}]
  %s2 = scalar_lea.vmem %s0, 112
  %v3 = vld [vmem:[%s2] sm:$0xff]
  %4 = vst [vmem:[%s1] sm:$0xff] %v3
  %s5 = scalar_lea.vmem %s0, 240
  %v6 = vld [vmem:[%s5] sm:$0xff]
  %s7 = scalar_lea.vmem %s1, 128
  %8 = vst [vmem:[%s7] sm:$0xff] %v6
  %s9 = scalar_lea.vmem %s0, 96
  %v10 = vld [vmem:[%s9] sm:$0xff]
  %s11 = scalar_lea.vmem %s1, 16
  %12 = vst [vmem:[%s11] sm:$0xff] %v10
  %s13 = scalar_lea.vmem %s0, 224
  %v14 = vld [vmem:[%s13] sm:$0xff]
  %s15 = scalar_lea.vmem %s1, 144
  %16 = vst [vmem:[%s15] sm:$0xff] %v14
  %s17 = scalar_lea.vmem %s0, 80
  %v18 = vld [vmem:[%s17] sm:$0xff]
  %s19 = scalar_lea.vmem %s1, 32
  %20 = vst [vmem:[%s19] sm:$0xff] %v18
  %s21 = scalar_lea.vmem %s0, 208
  %v22 = vld [vmem:[%s21] sm:$0xff]
  %s23 = scalar_lea.vmem %s1, 160
  %24 = vst [vmem:[%s23] sm:$0xff] %v22
  %s25 = scalar_lea.vmem %s0, 64
  %v26 = vld [vmem:[%s25] sm:$0xff]
  %s27 = scalar_lea.vmem %s1, 48
  %28 = vst [vmem:[%s27] sm:$0xff] %v26
  %s29 = scalar_lea.vmem %s0, 192
  %v30 = vld [vmem:[%s29] sm:$0xff]
  %s31 = scalar_lea.vmem %s1, 176
  %32 = vst [vmem:[%s31] sm:$0xff] %v30
  %s33 = scalar_lea.vmem %s0, 48
  %v34 = vld [vmem:[%s33] sm:$0xff]
  %s35 = scalar_lea.vmem %s1, 64
  %36 = vst [vmem:[%s35] sm:$0xff] %v34
  %s37 = scalar_lea.vmem %s0, 176
  %v38 = vld [vmem:[%s37] sm:$0xff]
  %s39 = scalar_lea.vmem %s1, 192
  %40 = vst [vmem:[%s39] sm:$0xff] %v38
  %s41 = scalar_lea.vmem %s0, 32
  %v42 = vld [vmem:[%s41] sm:$0xff]
  %s43 = scalar_lea.vmem %s1, 80
  %44 = vst [vmem:[%s43] sm:$0xff] %v42
  %s45 = scalar_lea.vmem %s0, 160
  %v46 = vld [vmem:[%s45] sm:$0xff]
  %s47 = scalar_lea.vmem %s1, 208
  %48 = vst [vmem:[%s47] sm:$0xff] %v46
  %s49 = scalar_lea.vmem %s0, 16
  %v50 = vld [vmem:[%s49] sm:$0xff]
  %s51 = scalar_lea.vmem %s1, 96
  %52 = vst [vmem:[%s51] sm:$0xff] %v50
  %s53 = scalar_lea.vmem %s0, 144
  %v54 = vld [vmem:[%s53] sm:$0xff]
  %s55 = scalar_lea.vmem %s1, 224
  %56 = vst [vmem:[%s55] sm:$0xff] %v54
  %v57 = vld [vmem:[%s0] sm:$0xff]
  %s58 = scalar_lea.vmem %s1, 112
  %59 = vst [vmem:[%s58] sm:$0xff] %v57
  %s60 = scalar_lea.vmem %s0, 128
  %v61 = vld [vmem:[%s60] sm:$0xff]
  %s62 = scalar_lea.vmem %s1, 240
  %63 = vst [vmem:[%s62] sm:$0xff] %v61
  %s64 = scalar_lea.vmem %s0, 120
  %v65 = vld [vmem:[%s64] sm:$0xff]
  %s66 = scalar_lea.vmem %s1, 8
  %67 = vst [vmem:[%s66] sm:$0xff] %v65
  %s68 = scalar_lea.vmem %s0, 248
  %v69 = vld [vmem:[%s68] sm:$0xff]
  %s70 = scalar_lea.vmem %s1, 136
  %71 = vst [vmem:[%s70] sm:$0xff] %v69
  %s72 = scalar_lea.vmem %s0, 104
  %v73 = vld [vmem:[%s72] sm:$0xff]
  %s74 = scalar_lea.vmem %s1, 24
  %75 = vst [vmem:[%s74] sm:$0xff] %v73
  %s76 = scalar_lea.vmem %s0, 232
  %v77 = vld [vmem:[%s76] sm:$0xff]
  %s78 = scalar_lea.vmem %s1, 152
  %79 = vst [vmem:[%s78] sm:$0xff] %v77
  %s80 = scalar_lea.vmem %s0, 88
  %v81 = vld [vmem:[%s80] sm:$0xff]
  %s82 = scalar_lea.vmem %s1, 40
  %83 = vst [vmem:[%s82] sm:$0xff] %v81
  %s84 = scalar_lea.vmem %s0, 216
  %v85 = vld [vmem:[%s84] sm:$0xff]
  %s86 = scalar_lea.vmem %s1, 168
  %87 = vst [vmem:[%s86] sm:$0xff] %v85
  %s88 = scalar_lea.vmem %s0, 72
  %v89 = vld [vmem:[%s88] sm:$0xff]
  %s90 = scalar_lea.vmem %s1, 56
  %91 = vst [vmem:[%s90] sm:$0xff] %v89
  %s92 = scalar_lea.vmem %s0, 200
  %v93 = vld [vmem:[%s92] sm:$0xff]
  %s94 = scalar_lea.vmem %s1, 184
  %95 = vst [vmem:[%s94] sm:$0xff] %v93
  %s96 = scalar_lea.vmem %s0, 56
  %v97 = vld [vmem:[%s96] sm:$0xff]
  %s98 = scalar_lea.vmem %s1, 72
  %99 = vst [vmem:[%s98] sm:$0xff] %v97
  %s100 = scalar_lea.vmem %s0, 184
  %v101 = vld [vmem:[%s100] sm:$0xff]
  %s102 = scalar_lea.vmem %s1, 200
  %103 = vst [vmem:[%s102] sm:$0xff] %v101
  %s104 = scalar_lea.vmem %s0, 40
  %v105 = vld [vmem:[%s104] sm:$0xff]
  %s106 = scalar_lea.vmem %s1, 88
  %107 = vst [vmem:[%s106] sm:$0xff] %v105
  %s108 = scalar_lea.vmem %s0, 168
  %v109 = vld [vmem:[%s108] sm:$0xff]
  %s110 = scalar_lea.vmem %s1, 216
  %111 = vst [vmem:[%s110] sm:$0xff] %v109
  %s112 = scalar_lea.vmem %s0, 24
  %v113 = vld [vmem:[%s112] sm:$0xff]
  %s114 = scalar_lea.vmem %s1, 104
  %115 = vst [vmem:[%s114] sm:$0xff] %v113
  %s116 = scalar_lea.vmem %s0, 152
  %v117 = vld [vmem:[%s116] sm:$0xff]
  %s118 = scalar_lea.vmem %s1, 232
  %119 = vst [vmem:[%s118] sm:$0xff] %v117
  %s120 = scalar_lea.vmem %s0, 8
  %v121 = vld [vmem:[%s120] sm:$0xff]
  %s122 = scalar_lea.vmem %s1, 120
  %123 = vst [vmem:[%s122] sm:$0xff] %v121
  %s124 = scalar_lea.vmem %s0, 136
  %v125 = vld [vmem:[%s124] sm:$0xff]
  %s126 = scalar_lea.vmem %s1, 248
  %127 = vst [vmem:[%s126] sm:$0xff] %v125

// kernel: fno2d_forward.12
$region0: #{fno2d_forward.12}
  #allocation0 [shape = 'u32[]', space=smem, size = 0x4, offset = 0x4, fixed_abs, tag = 'smem constant byte address 0x4 - core index']
  #allocation1 [shape = 'u32[144,128]{1,0:T(1,128)}', space=vmem, size = 0x12000, scoped, tag = 'internal scratch']
  %s0 = inlined_call_operand.vmem [shape: bf16[16,648], index: 0, kind: input, shape index: {}]
  %s1 = inlined_call_operand.vmem [shape: f32[16,648], index: 1, kind: input, shape index: {}]
  %s2 = inlined_call_operand.vmem [shape: bf16[16,16], index: 2, kind: input, shape index: {}]
  %s3 = inlined_call_operand.vmem [shape: f32[16,1], index: 3, kind: input, shape index: {}]
  %s4 = inlined_call_operand.vmem [shape: bf16[16,648], index: 4, kind: output, shape index: {}]
  %s5 = sld [smem:[#allocation0]]
  $region26: #{fno2d_forward.12} parent=0
    _
  %s7 = ssub.s32 1, %s5
  %s8 = scalar_select 0, %s7, %s5
  // Predicated region
  $region2: #{fno2d_forward.12} parent=0 // pred_check
    _
  $region3: #{fno2d_forward.12} parent=0 // pred_check_branch
    %10 = sbr.rel (0) target = $region5
  $region4: #{fno2d_forward.12} parent=0 // pred_region
    _
  $region5: #{fno2d_forward.12} parent=0 // pred_fallthru
    _
  // Predicated region
  $region6: #{fno2d_forward.12} parent=0 // pred_check
    _
  $region7: #{fno2d_forward.12} parent=0 // pred_check_branch
    %12 = sbr.rel (0) target = $region9
  $region8: #{fno2d_forward.12} parent=0 // pred_region
    _
  $region9: #{fno2d_forward.12} parent=0 // pred_fallthru
    _
  // Predicated region
  $region10: #{fno2d_forward.12} parent=0 // pred_check
    _
  $region11: #{fno2d_forward.12} parent=0 // pred_check_branch
    %14 = sbr.rel (0) target = $region13
  $region12: #{fno2d_forward.12} parent=0 // pred_region
    _
  $region13: #{fno2d_forward.12} parent=0 // pred_fallthru
    _
  // Predicated region
  $region14: #{fno2d_forward.12} parent=0 // pred_check
    _
  $region15: #{fno2d_forward.12} parent=0 // pred_check_branch
    %16 = sbr.rel (0) target = $region17
  $region16: #{fno2d_forward.12} parent=0 // pred_region
    _
  $region17: #{fno2d_forward.12} parent=0 // pred_fallthru
    _
  %v18 = vld [vmem:[%s0] sm:$0xff]
  %v19 = vld [vmem:[%s0 + $0x8] sm:$0xff]
  %v20 = vld [vmem:[%s0 + $0x10] sm:$0xff]
  %v21 = vld [vmem:[%s0 + $0x18] sm:$0xff]
  %v22 = vld [vmem:[%s0 + $0x20] sm:$0xff]
  %v23 = vld [vmem:[%s0 + $0x28] sm:$0xff]
  %v24 = vld [vmem:[%s1] sm:$0xff]
  %v25 = vld [vmem:[%s1 + $0x8] sm:$0xff]
  %v26 = vld [vmem:[%s1 + $0x10] sm:$0xff]
  %v27 = vld [vmem:[%s1 + $0x18] sm:$0xff]
  %v28 = vld [vmem:[%s1 + $0x20] sm:$0xff]
  %v29 = vld [vmem:[%s1 + $0x28] sm:$0xff]
  %v30 = vld [vmem:[%s1 + $0x30] sm:$0xff]
  %v31 = vld [vmem:[%s1 + $0x38] sm:$0xff]
  %v32 = vld [vmem:[%s1 + $0x40] sm:$0xff]
  %v33 = vld [vmem:[%s1 + $0x48] sm:$0xff]
  %v34 = vld [vmem:[%s1 + $0x50] sm:$0xff]
  %v35 = vld [vmem:[%s1 + $0x58] sm:$0xff]
  %v36 = vld [vmem:[%s2] sm:$0xf]
  %v37 = vld [vmem:[%s2 + $0x4] sm:$0xf]
  %v38 = vld [vmem:[%s3] sm:$0xff]
  %v39 = vld [vmem:[%s3 + $0x8] sm:$0xff]
  %41 = vset.pattern.permute.xlu0 0
  %42 = vperm.xlu0 %41, %v38
  %v43 = vpop.permute.xlu0 %42
  %46 = vset.pattern.permute.xlu0 0
  %47 = vperm.xlu0 %46, %v39
  %v48 = vpop.permute.xlu0 %47
  %v52 = vunpack.c.l.b16 %v36
  %v53 = vunpack.c.l.b16 %v37
  %v54 = vpack.c.b16 %v53, %v52
  %v61 = vunpack.c.l.b16 %v18
  %v62 = vunpack.c.h.b16 %v18
  %v63 = vunpack.c.l.b16 %v19
  %v64 = vunpack.c.h.b16 %v19
  %v65 = vunpack.c.l.b16 %v20
  %v66 = vunpack.c.h.b16 %v20
  %v67 = vunpack.c.l.b16 %v21
  %v68 = vunpack.c.h.b16 %v21
  %v69 = vunpack.c.l.b16 %v22
  %v70 = vunpack.c.h.b16 %v22
  %v71 = vunpack.c.l.b16 %v23
  %v72 = vunpack.c.h.b16 %v23
  %v73 = vpack.c.b16 %v67, %v61
  %v74 = vpack.c.b16 %v68, %v62
  %v75 = vpack.c.b16 %v69, %v63
  %v76 = vpack.c.b16 %v70, %v64
  %v77 = vpack.c.b16 %v71, %v65
  %v78 = vpack.c.b16 %v72, %v66
  %vm85 = vcmask 130048
  %v87 = vsel %vm85, %v54, 0
  %89 = vmatprep.subr.bf16.mxu0 %v74
  %90 = vmatpush1.bf16.msra.mxu0 %v73
  %91 = vmatprep.subr.bf16.mxu0 0
  %92 = vmatpush1.bf16.msra.mxu0 0
  %93 = vmatprep.subr.bf16.mxu0 0
  %94 = vmatpush1.bf16.msra.mxu0 0
  %95 = vmatprep.subr.bf16.mxu0 0
  %96 = vmatpush1.bf16.msra.mxu0 0
  %97 = vmatprep.subr.bf16.mxu0 0
  %98 = vmatpush1.bf16.msra.mxu0 0
  %99 = vmatprep.subr.bf16.mxu0 0
  %100 = vmatpush1.bf16.msra.mxu0 0
  %101 = vmatprep.subr.bf16.mxu0 0
  %102 = vmatpush1.bf16.msra.mxu0 0
  %103 = vmatprep.subr.bf16.mxu0 0
  %104 = vmatpush1.bf16.msra.mxu0 0
  %105 = vmatprep.subr.bf16.mxu0 0
  %106 = vmatpush1.bf16.msra.mxu0 0
  %107 = vmatprep.subr.bf16.mxu0 0
  %108 = vmatpush1.bf16.msra.mxu0 0
  %109 = vmatprep.subr.bf16.mxu0 0
  %110 = vmatpush1.bf16.msra.mxu0 0
  %111 = vmatprep.subr.bf16.mxu0 0
  %112 = vmatpush1.bf16.msra.mxu0 0
  %113 = vmatprep.subr.bf16.mxu0 0
  %114 = vmatpush1.bf16.msra.mxu0 0
  %115 = vmatprep.subr.bf16.mxu0 0
  %116 = vmatpush1.bf16.msra.mxu0 0
  %117 = vmatprep.subr.bf16.mxu0 0
  %118 = vmatpush1.bf16.msra.mxu0 0
  %119 = vmatprep.subr.bf16.mxu0 0
  %120 = vmatpush1.bf16.msra.mxu0 0
  %121 = vmatprep.mubr.bf16.mxu0 0
  %122 = vmatmul.mubr.bf16.gmra.mrb[0].mxu0 %v87
  %v123 = vpop.f32.mrb[0].mxu0
  %v124 = vadd.f32 %v43, %v123
  %v125 = vpop.f32.mrb[0].mxu0
  %v126 = vadd.f32 %v43, %v125
  %v127 = vpop.f32.mrb[0].mxu0
  %v128 = vadd.f32 %v48, %v127
  %v129 = vpop.f32.mrb[0].mxu0
  %v130 = vadd.f32 %v48, %v129
  %131 = vdwg.mxu0
  %132 = vmatprep.subr.bf16.mxu0 %v76
  %133 = vmatpush1.bf16.msra.mxu0 %v75
  %134 = vmatprep.subr.bf16.mxu0 0
  %135 = vmatpush1.bf16.msra.mxu0 0
  %136 = vmatprep.subr.bf16.mxu0 0
  %137 = vmatpush1.bf16.msra.mxu0 0
  %138 = vmatprep.subr.bf16.mxu0 0
  %139 = vmatpush1.bf16.msra.mxu0 0
  %140 = vmatprep.subr.bf16.mxu0 0
  %141 = vmatpush1.bf16.msra.mxu0 0
  %142 = vmatprep.subr.bf16.mxu0 0
  %143 = vmatpush1.bf16.msra.mxu0 0
  %144 = vmatprep.subr.bf16.mxu0 0
  %145 = vmatpush1.bf16.msra.mxu0 0
  %146 = vmatprep.subr.bf16.mxu0 0
  %147 = vmatpush1.bf16.msra.mxu0 0
  %148 = vmatprep.subr.bf16.mxu0 0
  %149 = vmatpush1.bf16.msra.mxu0 0
  %150 = vmatprep.subr.bf16.mxu0 0
  %151 = vmatpush1.bf16.msra.mxu0 0
  %152 = vmatprep.subr.bf16.mxu0 0
  %153 = vmatpush1.bf16.msra.mxu0 0
  %154 = vmatprep.subr.bf16.mxu0 0
  %155 = vmatpush1.bf16.msra.mxu0 0
  %156 = vmatprep.subr.bf16.mxu0 0
  %157 = vmatpush1.bf16.msra.mxu0 0
  %158 = vmatprep.subr.bf16.mxu0 0
  %159 = vmatpush1.bf16.msra.mxu0 0
  %160 = vmatprep.subr.bf16.mxu0 0
  %161 = vmatpush1.bf16.msra.mxu0 0
  %162 = vmatprep.subr.bf16.mxu0 0
  %163 = vmatpush1.bf16.msra.mxu0 0
  %164 = vmatprep.mubr.bf16.mxu0 0
  %165 = vmatmul.mubr.bf16.gmra.mrb[0].mxu0 %v87
  %v166 = vpop.f32.mrb[0].mxu0
  %v167 = vadd.f32 %v43, %v166
  %v168 = vpop.f32.mrb[0].mxu0
  %v169 = vadd.f32 %v43, %v168
  %v170 = vpop.f32.mrb[0].mxu0
  %v171 = vadd.f32 %v48, %v170
  %v172 = vpop.f32.mrb[0].mxu0
  %v173 = vadd.f32 %v48, %v172
  %174 = vdwg.mxu0
  %175 = vmatprep.subr.bf16.mxu0 %v78
  %176 = vmatpush1.bf16.msra.mxu0 %v77
  %177 = vmatprep.subr.bf16.mxu0 0
  %178 = vmatpush1.bf16.msra.mxu0 0
  %179 = vmatprep.subr.bf16.mxu0 0
  %180 = vmatpush1.bf16.msra.mxu0 0
  %181 = vmatprep.subr.bf16.mxu0 0
  %182 = vmatpush1.bf16.msra.mxu0 0
  %183 = vmatprep.subr.bf16.mxu0 0
  %184 = vmatpush1.bf16.msra.mxu0 0
  %185 = vmatprep.subr.bf16.mxu0 0
  %186 = vmatpush1.bf16.msra.mxu0 0
  %187 = vmatprep.subr.bf16.mxu0 0
  %188 = vmatpush1.bf16.msra.mxu0 0
  %189 = vmatprep.subr.bf16.mxu0 0
  %190 = vmatpush1.bf16.msra.mxu0 0
  %191 = vmatprep.subr.bf16.mxu0 0
  %192 = vmatpush1.bf16.msra.mxu0 0
  %193 = vmatprep.subr.bf16.mxu0 0
  %194 = vmatpush1.bf16.msra.mxu0 0
  %195 = vmatprep.subr.bf16.mxu0 0
  %196 = vmatpush1.bf16.msra.mxu0 0
  %197 = vmatprep.subr.bf16.mxu0 0
  %198 = vmatpush1.bf16.msra.mxu0 0
  %199 = vmatprep.subr.bf16.mxu0 0
  %200 = vmatpush1.bf16.msra.mxu0 0
  %201 = vmatprep.subr.bf16.mxu0 0
  %202 = vmatpush1.bf16.msra.mxu0 0
  %203 = vmatprep.subr.bf16.mxu0 0
  %204 = vmatpush1.bf16.msra.mxu0 0
  %205 = vmatprep.subr.bf16.mxu0 0
  %206 = vmatpush1.bf16.msra.mxu0 0
  %207 = vmatprep.mubr.bf16.mxu0 0
  %208 = vmatmul.mubr.bf16.gmra.mrb[0].mxu0 %v87
  %v209 = vpop.f32.mrb[0].mxu0
  %v210 = vadd.f32 %v43, %v209
  %v211 = vpop.f32.mrb[0].mxu0
  %v212 = vadd.f32 %v43, %v211
  %v213 = vpop.f32.mrb[0].mxu0
  %v214 = vadd.f32 %v48, %v213
  %v215 = vpop.f32.mrb[0].mxu0
  %v216 = vadd.f32 %v48, %v215
  %217 = vdwg.mxu0
  %v218 = vadd.f32 %v124, %v24
  %v219 = vadd.f32 %v126, %v25
  %v220 = vadd.f32 %v167, %v26
  %v221 = vadd.f32 %v169, %v27
  %v222 = vadd.f32 %v210, %v28
  %v223 = vadd.f32 %v212, %v29
  %v224 = vadd.f32 %v128, %v30
  %v225 = vadd.f32 %v130, %v31
  %v226 = vadd.f32 %v171, %v32
  %v227 = vadd.f32 %v173, %v33
  %v228 = vadd.f32 %v214, %v34
  %v229 = vadd.f32 %v216, %v35
  %v230 = vmul.f32 %v218, 0.5
  %v231 = vmul.f32 %v219, 0.5
  %v232 = vmul.f32 %v220, 0.5
  %v233 = vmul.f32 %v221, 0.5
  %v234 = vmul.f32 %v222, 0.5
  %v235 = vmul.f32 %v223, 0.5
  %v236 = vmul.f32 %v224, 0.5
  %v237 = vmul.f32 %v225, 0.5
  %v238 = vmul.f32 %v226, 0.5
  %v239 = vmul.f32 %v227, 0.5
  %v240 = vmul.f32 %v228, 0.5
  %v241 = vmul.f32 %v229, 0.5
  %v242 = vmul.f32 %v218, 0.70710677
  %v243 = vmul.f32 %v219, 0.70710677
  %v244 = vmul.f32 %v220, 0.70710677
  %v245 = vmul.f32 %v221, 0.70710677
  %v246 = vmul.f32 %v222, 0.70710677
  %v247 = vmul.f32 %v223, 0.70710677
  %v248 = vmul.f32 %v224, 0.70710677
  %v249 = vmul.f32 %v225, 0.70710677
  %v250 = vmul.f32 %v226, 0.70710677
  %v251 = vmul.f32 %v227, 0.70710677
  %v252 = vmul.f32 %v228, 0.70710677
  %v253 = vmul.f32 %v229, 0.70710677
  %v254 = verf.f32.pop %v242
  %v255 = verf.f32.pop %v243
  %v256 = verf.f32.pop %v244
  %v257 = verf.f32.pop %v245
  %v258 = verf.f32.pop %v246
  %v259 = verf.f32.pop %v247
  %v260 = verf.f32.pop %v248
  %v261 = verf.f32.pop %v249
  %v262 = verf.f32.pop %v250
  %v263 = verf.f32.pop %v251
  %v264 = verf.f32.pop %v252
  %v265 = verf.f32.pop %v253
  %v266 = vadd.f32 %v254, 1.0
  %v267 = vadd.f32 %v255, 1.0
  %v268 = vadd.f32 %v256, 1.0
  %v269 = vadd.f32 %v257, 1.0
  %v270 = vadd.f32 %v258, 1.0
  %v271 = vadd.f32 %v259, 1.0
  %v272 = vadd.f32 %v260, 1.0
  %v273 = vadd.f32 %v261, 1.0
  %v274 = vadd.f32 %v262, 1.0
  %v275 = vadd.f32 %v263, 1.0
  %v276 = vadd.f32 %v264, 1.0
  %v277 = vadd.f32 %v265, 1.0
  %v278 = vmul.f32 %v230, %v266
  %v279 = vmul.f32 %v231, %v267
  %v280 = vmul.f32 %v232, %v268
  %v281 = vmul.f32 %v233, %v269
  %v282 = vmul.f32 %v234, %v270
  %v283 = vmul.f32 %v235, %v271
  %v284 = vmul.f32 %v236, %v272
  %v285 = vmul.f32 %v237, %v273
  %v286 = vmul.f32 %v238, %v274
  %v287 = vmul.f32 %v239, %v275
  %v288 = vmul.f32 %v240, %v276
  %v289 = vmul.f32 %v241, %v277
  %v290 = vpack.c.bf16 %v284, %v278
  %v291 = vpack.c.bf16 %v285, %v279
  %v292 = vpack.c.bf16 %v286, %v280
  %v293 = vpack.c.bf16 %v287, %v281
  %v294 = vpack.c.bf16 %v288, %v282
  %v295 = vpack.c.bf16 %v289, %v283
  %v302 = vunpack.c.l.b16 %v290
  %v303 = vunpack.c.l.b16 %v291
  %v304 = vunpack.c.l.b16 %v292
  %v305 = vunpack.c.l.b16 %v293
  %v306 = vunpack.c.l.b16 %v294
  %v307 = vunpack.c.l.b16 %v295
  %v308 = vunpack.c.h.b16 %v290
  %v309 = vunpack.c.h.b16 %v291
  %v310 = vunpack.c.h.b16 %v292
  %v311 = vunpack.c.h.b16 %v293
  %v312 = vunpack.c.h.b16 %v294
  %v313 = vunpack.c.h.b16 %v295
  %v314 = vpack.c.b16 %v303, %v302
  %v315 = vpack.c.b16 %v305, %v304
  %v316 = vpack.c.b16 %v307, %v306
  %v317 = vpack.c.b16 %v309, %v308
  %v318 = vpack.c.b16 %v311, %v310
  %v319 = vpack.c.b16 %v313, %v312
  %326 = vst [vmem:[%s4] sm:$0xff] %v314
  %327 = vst [vmem:[%s4 + $0x8] sm:$0xff] %v315
  %328 = vst [vmem:[%s4 + $0x10] sm:$0xff] %v316
  %329 = vst [vmem:[%s4 + $0x18] sm:$0xff] %v317
  %330 = vst [vmem:[%s4 + $0x20] sm:$0xff] %v318
  %331 = vst [vmem:[%s4 + $0x28] sm:$0xff] %v319
  // Predicated region
  $region18: #{fno2d_forward.12} parent=0 // pred_check
    _
  $region19: #{fno2d_forward.12} parent=0 // pred_check_branch
    %333 = sbr.rel (0) target = $region21
  $region20: #{fno2d_forward.12} parent=0 // pred_region
    _
  $region21: #{fno2d_forward.12} parent=0 // pred_fallthru
    _
  // Predicated region
  $region22: #{fno2d_forward.12} parent=0 // pred_check
    _
  $region23: #{fno2d_forward.12} parent=0 // pred_check_branch
    %335 = sbr.rel (0) target = $region25
  $region24: #{fno2d_forward.12} parent=0 // pred_region
    _
  $region25: #{fno2d_forward.12} parent=0 // pred_fallthru
    _

// kernel: fno2d_forward.18
$region0: #{fno2d_forward.18}
  #allocation0 [shape = 'u32[]', space=smem, size = 0x4, offset = 0x4, fixed_abs, tag = 'smem constant byte address 0x4 - core index']
  #allocation1 [shape = 'u32[144,128]{1,0:T(1,128)}', space=vmem, size = 0x12000, scoped, tag = 'internal scratch']
  %s0 = inlined_call_operand.vmem [shape: bf16[16,648], index: 0, kind: input, shape index: {}]
  %s1 = inlined_call_operand.vmem [shape: f32[16,648], index: 1, kind: input, shape index: {}]
  %s2 = inlined_call_operand.vmem [shape: bf16[16,16], index: 2, kind: input, shape index: {}]
  %s3 = inlined_call_operand.vmem [shape: f32[16,1], index: 3, kind: input, shape index: {}]
  %s4 = inlined_call_operand.vmem [shape: bf16[16,648], index: 4, kind: output, shape index: {}]
  %s5 = sld [smem:[#allocation0]]
  $region26: #{fno2d_forward.18} parent=0
    _
  %s7 = ssub.s32 1, %s5
  %s8 = scalar_select 0, %s7, %s5
  // Predicated region
  $region2: #{fno2d_forward.18} parent=0 // pred_check
    _
  $region3: #{fno2d_forward.18} parent=0 // pred_check_branch
    %10 = sbr.rel (0) target = $region5
  $region4: #{fno2d_forward.18} parent=0 // pred_region
    _
  $region5: #{fno2d_forward.18} parent=0 // pred_fallthru
    _
  // Predicated region
  $region6: #{fno2d_forward.18} parent=0 // pred_check
    _
  $region7: #{fno2d_forward.18} parent=0 // pred_check_branch
    %12 = sbr.rel (0) target = $region9
  $region8: #{fno2d_forward.18} parent=0 // pred_region
    _
  $region9: #{fno2d_forward.18} parent=0 // pred_fallthru
    _
  // Predicated region
  $region10: #{fno2d_forward.18} parent=0 // pred_check
    _
  $region11: #{fno2d_forward.18} parent=0 // pred_check_branch
    %14 = sbr.rel (0) target = $region13
  $region12: #{fno2d_forward.18} parent=0 // pred_region
    _
  $region13: #{fno2d_forward.18} parent=0 // pred_fallthru
    _
  // Predicated region
  $region14: #{fno2d_forward.18} parent=0 // pred_check
    _
  $region15: #{fno2d_forward.18} parent=0 // pred_check_branch
    %16 = sbr.rel (0) target = $region17
  $region16: #{fno2d_forward.18} parent=0 // pred_region
    _
  $region17: #{fno2d_forward.18} parent=0 // pred_fallthru
    _
  %v18 = vld [vmem:[%s0] sm:$0xff]
  %v19 = vld [vmem:[%s0 + $0x8] sm:$0xff]
  %v20 = vld [vmem:[%s0 + $0x10] sm:$0xff]
  %v21 = vld [vmem:[%s0 + $0x18] sm:$0xff]
  %v22 = vld [vmem:[%s0 + $0x20] sm:$0xff]
  %v23 = vld [vmem:[%s0 + $0x28] sm:$0xff]
  %v24 = vld [vmem:[%s1] sm:$0xff]
  %v25 = vld [vmem:[%s1 + $0x8] sm:$0xff]
  %v26 = vld [vmem:[%s1 + $0x10] sm:$0xff]
  %v27 = vld [vmem:[%s1 + $0x18] sm:$0xff]
  %v28 = vld [vmem:[%s1 + $0x20] sm:$0xff]
  %v29 = vld [vmem:[%s1 + $0x28] sm:$0xff]
  %v30 = vld [vmem:[%s1 + $0x30] sm:$0xff]
  %v31 = vld [vmem:[%s1 + $0x38] sm:$0xff]
  %v32 = vld [vmem:[%s1 + $0x40] sm:$0xff]
  %v33 = vld [vmem:[%s1 + $0x48] sm:$0xff]
  %v34 = vld [vmem:[%s1 + $0x50] sm:$0xff]
  %v35 = vld [vmem:[%s1 + $0x58] sm:$0xff]
  %v36 = vld [vmem:[%s2] sm:$0xf]
  %v37 = vld [vmem:[%s2 + $0x4] sm:$0xf]
  %v38 = vld [vmem:[%s3] sm:$0xff]
  %v39 = vld [vmem:[%s3 + $0x8] sm:$0xff]
  %41 = vset.pattern.permute.xlu0 0
  %42 = vperm.xlu0 %41, %v38
  %v43 = vpop.permute.xlu0 %42
  %46 = vset.pattern.permute.xlu0 0
  %47 = vperm.xlu0 %46, %v39
  %v48 = vpop.permute.xlu0 %47
  %v52 = vunpack.c.l.b16 %v36
  %v53 = vunpack.c.l.b16 %v37
  %v54 = vpack.c.b16 %v53, %v52
  %v61 = vunpack.c.l.b16 %v18
  %v62 = vunpack.c.h.b16 %v18
  %v63 = vunpack.c.l.b16 %v19
  %v64 = vunpack.c.h.b16 %v19
  %v65 = vunpack.c.l.b16 %v20
  %v66 = vunpack.c.h.b16 %v20
  %v67 = vunpack.c.l.b16 %v21
  %v68 = vunpack.c.h.b16 %v21
  %v69 = vunpack.c.l.b16 %v22
  %v70 = vunpack.c.h.b16 %v22
  %v71 = vunpack.c.l.b16 %v23
  %v72 = vunpack.c.h.b16 %v23
  %v73 = vpack.c.b16 %v67, %v61
  %v74 = vpack.c.b16 %v68, %v62
  %v75 = vpack.c.b16 %v69, %v63
  %v76 = vpack.c.b16 %v70, %v64
  %v77 = vpack.c.b16 %v71, %v65
  %v78 = vpack.c.b16 %v72, %v66
  %vm85 = vcmask 130048
  %v87 = vsel %vm85, %v54, 0
  %89 = vmatprep.subr.bf16.mxu0 %v74
  %90 = vmatpush1.bf16.msra.mxu0 %v73
  %91 = vmatprep.subr.bf16.mxu0 0
  %92 = vmatpush1.bf16.msra.mxu0 0
  %93 = vmatprep.subr.bf16.mxu0 0
  %94 = vmatpush1.bf16.msra.mxu0 0
  %95 = vmatprep.subr.bf16.mxu0 0
  %96 = vmatpush1.bf16.msra.mxu0 0
  %97 = vmatprep.subr.bf16.mxu0 0
  %98 = vmatpush1.bf16.msra.mxu0 0
  %99 = vmatprep.subr.bf16.mxu0 0
  %100 = vmatpush1.bf16.msra.mxu0 0
  %101 = vmatprep.subr.bf16.mxu0 0
  %102 = vmatpush1.bf16.msra.mxu0 0
  %103 = vmatprep.subr.bf16.mxu0 0
  %104 = vmatpush1.bf16.msra.mxu0 0
  %105 = vmatprep.subr.bf16.mxu0 0
  %106 = vmatpush1.bf16.msra.mxu0 0
  %107 = vmatprep.subr.bf16.mxu0 0
  %108 = vmatpush1.bf16.msra.mxu0 0
  %109 = vmatprep.subr.bf16.mxu0 0
  %110 = vmatpush1.bf16.msra.mxu0 0
  %111 = vmatprep.subr.bf16.mxu0 0
  %112 = vmatpush1.bf16.msra.mxu0 0
  %113 = vmatprep.subr.bf16.mxu0 0
  %114 = vmatpush1.bf16.msra.mxu0 0
  %115 = vmatprep.subr.bf16.mxu0 0
  %116 = vmatpush1.bf16.msra.mxu0 0
  %117 = vmatprep.subr.bf16.mxu0 0
  %118 = vmatpush1.bf16.msra.mxu0 0
  %119 = vmatprep.subr.bf16.mxu0 0
  %120 = vmatpush1.bf16.msra.mxu0 0
  %121 = vmatprep.mubr.bf16.mxu0 0
  %122 = vmatmul.mubr.bf16.gmra.mrb[0].mxu0 %v87
  %v123 = vpop.f32.mrb[0].mxu0
  %v124 = vadd.f32 %v43, %v123
  %v125 = vpop.f32.mrb[0].mxu0
  %v126 = vadd.f32 %v43, %v125
  %v127 = vpop.f32.mrb[0].mxu0
  %v128 = vadd.f32 %v48, %v127
  %v129 = vpop.f32.mrb[0].mxu0
  %v130 = vadd.f32 %v48, %v129
  %131 = vdwg.mxu0
  %132 = vmatprep.subr.bf16.mxu0 %v76
  %133 = vmatpush1.bf16.msra.mxu0 %v75
  %134 = vmatprep.subr.bf16.mxu0 0
  %135 = vmatpush1.bf16.msra.mxu0 0
  %136 = vmatprep.subr.bf16.mxu0 0
  %137 = vmatpush1.bf16.msra.mxu0 0
  %138 = vmatprep.subr.bf16.mxu0 0
  %139 = vmatpush1.bf16.msra.mxu0 0
  %140 = vmatprep.subr.bf16.mxu0 0
  %141 = vmatpush1.bf16.msra.mxu0 0
  %142 = vmatprep.subr.bf16.mxu0 0
  %143 = vmatpush1.bf16.msra.mxu0 0
  %144 = vmatprep.subr.bf16.mxu0 0
  %145 = vmatpush1.bf16.msra.mxu0 0
  %146 = vmatprep.subr.bf16.mxu0 0
  %147 = vmatpush1.bf16.msra.mxu0 0
  %148 = vmatprep.subr.bf16.mxu0 0
  %149 = vmatpush1.bf16.msra.mxu0 0
  %150 = vmatprep.subr.bf16.mxu0 0
  %151 = vmatpush1.bf16.msra.mxu0 0
  %152 = vmatprep.subr.bf16.mxu0 0
  %153 = vmatpush1.bf16.msra.mxu0 0
  %154 = vmatprep.subr.bf16.mxu0 0
  %155 = vmatpush1.bf16.msra.mxu0 0
  %156 = vmatprep.subr.bf16.mxu0 0
  %157 = vmatpush1.bf16.msra.mxu0 0
  %158 = vmatprep.subr.bf16.mxu0 0
  %159 = vmatpush1.bf16.msra.mxu0 0
  %160 = vmatprep.subr.bf16.mxu0 0
  %161 = vmatpush1.bf16.msra.mxu0 0
  %162 = vmatprep.subr.bf16.mxu0 0
  %163 = vmatpush1.bf16.msra.mxu0 0
  %164 = vmatprep.mubr.bf16.mxu0 0
  %165 = vmatmul.mubr.bf16.gmra.mrb[0].mxu0 %v87
  %v166 = vpop.f32.mrb[0].mxu0
  %v167 = vadd.f32 %v43, %v166
  %v168 = vpop.f32.mrb[0].mxu0
  %v169 = vadd.f32 %v43, %v168
  %v170 = vpop.f32.mrb[0].mxu0
  %v171 = vadd.f32 %v48, %v170
  %v172 = vpop.f32.mrb[0].mxu0
  %v173 = vadd.f32 %v48, %v172
  %174 = vdwg.mxu0
  %175 = vmatprep.subr.bf16.mxu0 %v78
  %176 = vmatpush1.bf16.msra.mxu0 %v77
  %177 = vmatprep.subr.bf16.mxu0 0
  %178 = vmatpush1.bf16.msra.mxu0 0
  %179 = vmatprep.subr.bf16.mxu0 0
  %180 = vmatpush1.bf16.msra.mxu0 0
  %181 = vmatprep.subr.bf16.mxu0 0
  %182 = vmatpush1.bf16.msra.mxu0 0
  %183 = vmatprep.subr.bf16.mxu0 0
  %184 = vmatpush1.bf16.msra.mxu0 0
  %185 = vmatprep.subr.bf16.mxu0 0
  %186 = vmatpush1.bf16.msra.mxu0 0
  %187 = vmatprep.subr.bf16.mxu0 0
  %188 = vmatpush1.bf16.msra.mxu0 0
  %189 = vmatprep.subr.bf16.mxu0 0
  %190 = vmatpush1.bf16.msra.mxu0 0
  %191 = vmatprep.subr.bf16.mxu0 0
  %192 = vmatpush1.bf16.msra.mxu0 0
  %193 = vmatprep.subr.bf16.mxu0 0
  %194 = vmatpush1.bf16.msra.mxu0 0
  %195 = vmatprep.subr.bf16.mxu0 0
  %196 = vmatpush1.bf16.msra.mxu0 0
  %197 = vmatprep.subr.bf16.mxu0 0
  %198 = vmatpush1.bf16.msra.mxu0 0
  %199 = vmatprep.subr.bf16.mxu0 0
  %200 = vmatpush1.bf16.msra.mxu0 0
  %201 = vmatprep.subr.bf16.mxu0 0
  %202 = vmatpush1.bf16.msra.mxu0 0
  %203 = vmatprep.subr.bf16.mxu0 0
  %204 = vmatpush1.bf16.msra.mxu0 0
  %205 = vmatprep.subr.bf16.mxu0 0
  %206 = vmatpush1.bf16.msra.mxu0 0
  %207 = vmatprep.mubr.bf16.mxu0 0
  %208 = vmatmul.mubr.bf16.gmra.mrb[0].mxu0 %v87
  %v209 = vpop.f32.mrb[0].mxu0
  %v210 = vadd.f32 %v43, %v209
  %v211 = vpop.f32.mrb[0].mxu0
  %v212 = vadd.f32 %v43, %v211
  %v213 = vpop.f32.mrb[0].mxu0
  %v214 = vadd.f32 %v48, %v213
  %v215 = vpop.f32.mrb[0].mxu0
  %v216 = vadd.f32 %v48, %v215
  %217 = vdwg.mxu0
  %v218 = vadd.f32 %v124, %v24
  %v219 = vadd.f32 %v126, %v25
  %v220 = vadd.f32 %v167, %v26
  %v221 = vadd.f32 %v169, %v27
  %v222 = vadd.f32 %v210, %v28
  %v223 = vadd.f32 %v212, %v29
  %v224 = vadd.f32 %v128, %v30
  %v225 = vadd.f32 %v130, %v31
  %v226 = vadd.f32 %v171, %v32
  %v227 = vadd.f32 %v173, %v33
  %v228 = vadd.f32 %v214, %v34
  %v229 = vadd.f32 %v216, %v35
  %v230 = vpack.c.bf16 %v224, %v218
  %v231 = vpack.c.bf16 %v225, %v219
  %v232 = vpack.c.bf16 %v226, %v220
  %v233 = vpack.c.bf16 %v227, %v221
  %v234 = vpack.c.bf16 %v228, %v222
  %v235 = vpack.c.bf16 %v229, %v223
  %v242 = vunpack.c.l.b16 %v230
  %v243 = vunpack.c.l.b16 %v231
  %v244 = vunpack.c.l.b16 %v232
  %v245 = vunpack.c.l.b16 %v233
  %v246 = vunpack.c.l.b16 %v234
  %v247 = vunpack.c.l.b16 %v235
  %v248 = vunpack.c.h.b16 %v230
  %v249 = vunpack.c.h.b16 %v231
  %v250 = vunpack.c.h.b16 %v232
  %v251 = vunpack.c.h.b16 %v233
  %v252 = vunpack.c.h.b16 %v234
  %v253 = vunpack.c.h.b16 %v235
  %v254 = vpack.c.b16 %v243, %v242
  %v255 = vpack.c.b16 %v245, %v244
  %v256 = vpack.c.b16 %v247, %v246
  %v257 = vpack.c.b16 %v249, %v248
  %v258 = vpack.c.b16 %v251, %v250
  %v259 = vpack.c.b16 %v253, %v252
  %266 = vst [vmem:[%s4] sm:$0xff] %v254
  %267 = vst [vmem:[%s4 + $0x8] sm:$0xff] %v255
  %268 = vst [vmem:[%s4 + $0x10] sm:$0xff] %v256
  %269 = vst [vmem:[%s4 + $0x18] sm:$0xff] %v257
  %270 = vst [vmem:[%s4 + $0x20] sm:$0xff] %v258
  %271 = vst [vmem:[%s4 + $0x28] sm:$0xff] %v259
  // Predicated region
  $region18: #{fno2d_forward.18} parent=0 // pred_check
    _
  $region19: #{fno2d_forward.18} parent=0 // pred_check_branch
    %273 = sbr.rel (0) target = $region21
  $region20: #{fno2d_forward.18} parent=0 // pred_region
    _
  $region21: #{fno2d_forward.18} parent=0 // pred_fallthru
    _
  // Predicated region
  $region22: #{fno2d_forward.18} parent=0 // pred_check
    _
  $region23: #{fno2d_forward.18} parent=0 // pred_check_branch
    %275 = sbr.rel (0) target = $region25
  $region24: #{fno2d_forward.18} parent=0 // pred_region
    _
  $region25: #{fno2d_forward.18} parent=0 // pred_fallthru
    _

// kernel: fno2d_forward.19
$region0: #{fno2d_forward.19}
  #allocation0 [shape = 'u32[]', space=smem, size = 0x4, offset = 0x4, fixed_abs, tag = 'smem constant byte address 0x4 - core index']
  #allocation1 [shape = 'u32[144,128]{1,0:T(1,128)}', space=vmem, size = 0x12000, scoped, tag = 'internal scratch']
  #allocation2 [shape = 'f32[1,1]{1,0:T(1,128)S(1)}', space=vmem, size = 0x200, scoped, tag = 'scoped memory for fno2d_forward.19']
  %s0 = inlined_call_operand.vmem [shape: bf16[16,512], index: 0, kind: input, shape index: {}]
  %s1 = inlined_call_operand.vmem [shape: bf16[128,16], index: 1, kind: input, shape index: {}]
  %s2 = inlined_call_operand.vmem [shape: f32[128,1], index: 2, kind: input, shape index: {}]
  %s3 = inlined_call_operand.vmem [shape: bf16[1,128], index: 3, kind: input, shape index: {}]
  %s4 = inlined_call_operand.<no memory space> [shape: f32[1,1], index: 4, kind: input, shape index: {}]
  %s5 = inlined_call_operand.vmem [shape: f32[1,512], index: 5, kind: output, shape index: {}]
  %s6 = sld [smem:[#allocation0]]
  $region30: #{fno2d_forward.19} parent=0
    _
  %s8 = ssub.s32 1, %s6
  %s9 = scalar_select 0, %s8, %s6
  %v10 = vstv %s4
  %11 = vst [vmem:[#allocation2] sm:$0x1] %v10
  // Predicated region
  $region2: #{fno2d_forward.19} parent=0 // pred_check
    _
  $region3: #{fno2d_forward.19} parent=0 // pred_check_branch
    %13 = sbr.rel (0) target = $region5
  $region4: #{fno2d_forward.19} parent=0 // pred_region
    _
  $region5: #{fno2d_forward.19} parent=0 // pred_fallthru
    _
  // Predicated region
  $region6: #{fno2d_forward.19} parent=0 // pred_check
    _
  $region7: #{fno2d_forward.19} parent=0 // pred_check_branch
    %15 = sbr.rel (0) target = $region9
  $region8: #{fno2d_forward.19} parent=0 // pred_region
    _
  $region9: #{fno2d_forward.19} parent=0 // pred_fallthru
    _
  // Predicated region
  $region10: #{fno2d_forward.19} parent=0 // pred_check
    _
  $region11: #{fno2d_forward.19} parent=0 // pred_check_branch
    %17 = sbr.rel (0) target = $region13
  $region12: #{fno2d_forward.19} parent=0 // pred_region
    _
  $region13: #{fno2d_forward.19} parent=0 // pred_fallthru
    _
  // Predicated region
  $region14: #{fno2d_forward.19} parent=0 // pred_check
    _
  $region15: #{fno2d_forward.19} parent=0 // pred_check_branch
    %19 = sbr.rel (0) target = $region17
  $region16: #{fno2d_forward.19} parent=0 // pred_region
    _
  $region17: #{fno2d_forward.19} parent=0 // pred_fallthru
    _
  // Predicated region
  $region18: #{fno2d_forward.19} parent=0 // pred_check
    _
  $region19: #{fno2d_forward.19} parent=0 // pred_check_branch
    %21 = sbr.rel (0) target = $region21
  $region20: #{fno2d_forward.19} parent=0 // pred_region
    _
  $region21: #{fno2d_forward.19} parent=0 // pred_fallthru
    _
  %v23 = vld [vmem:[%s0] sm:$0xff]
  %v24 = vld [vmem:[%s0 + $0x8] sm:$0xff]
  %v25 = vld [vmem:[%s0 + $0x10] sm:$0xff]
  %v26 = vld [vmem:[%s0 + $0x18] sm:$0xff]
  %v27 = vld [vmem:[%s1] sm:$0xf]
  %v28 = vld [vmem:[%s1 + $0x4] sm:$0xf]
  %v29 = vld [vmem:[%s1 + $0x8] sm:$0xf]
  %v30 = vld [vmem:[%s1 + $0xc] sm:$0xf]
  %v31 = vld [vmem:[%s1 + $0x10] sm:$0xf]
  %v32 = vld [vmem:[%s1 + $0x14] sm:$0xf]
  %v33 = vld [vmem:[%s1 + $0x18] sm:$0xf]
  %v34 = vld [vmem:[%s1 + $0x1c] sm:$0xf]
  %v35 = vld [vmem:[%s1 + $0x20] sm:$0xf]
  %v36 = vld [vmem:[%s1 + $0x24] sm:$0xf]
  %v37 = vld [vmem:[%s1 + $0x28] sm:$0xf]
  %v38 = vld [vmem:[%s1 + $0x2c] sm:$0xf]
  %v39 = vld [vmem:[%s1 + $0x30] sm:$0xf]
  %v40 = vld [vmem:[%s1 + $0x34] sm:$0xf]
  %v41 = vld [vmem:[%s1 + $0x38] sm:$0xf]
  %v42 = vld [vmem:[%s1 + $0x3c] sm:$0xf]
  %v43 = vld [vmem:[%s2] sm:$0xff]
  %v44 = vld [vmem:[%s2 + $0x8] sm:$0xff]
  %v45 = vld [vmem:[%s2 + $0x10] sm:$0xff]
  %v46 = vld [vmem:[%s2 + $0x18] sm:$0xff]
  %v47 = vld [vmem:[%s2 + $0x20] sm:$0xff]
  %v48 = vld [vmem:[%s2 + $0x28] sm:$0xff]
  %v49 = vld [vmem:[%s2 + $0x30] sm:$0xff]
  %v50 = vld [vmem:[%s2 + $0x38] sm:$0xff]
  %v51 = vld [vmem:[%s2 + $0x40] sm:$0xff]
  %v52 = vld [vmem:[%s2 + $0x48] sm:$0xff]
  %v53 = vld [vmem:[%s2 + $0x50] sm:$0xff]
  %v54 = vld [vmem:[%s2 + $0x58] sm:$0xff]
  %v55 = vld [vmem:[%s2 + $0x60] sm:$0xff]
  %v56 = vld [vmem:[%s2 + $0x68] sm:$0xff]
  %v57 = vld [vmem:[%s2 + $0x70] sm:$0xff]
  %v58 = vld [vmem:[%s2 + $0x78] sm:$0xff]
  %60 = vset.pattern.permute.xlu0 0
  %61 = vperm.xlu0 %60, %v43
  %v62 = vpop.permute.xlu0 %61
  %65 = vset.pattern.permute.xlu0 0
  %66 = vperm.xlu0 %65, %v44
  %v67 = vpop.permute.xlu0 %66
  %70 = vset.pattern.permute.xlu0 0
  %71 = vperm.xlu0 %70, %v45
  %v72 = vpop.permute.xlu0 %71
  %75 = vset.pattern.permute.xlu0 0
  %76 = vperm.xlu0 %75, %v46
  %v77 = vpop.permute.xlu0 %76
  %80 = vset.pattern.permute.xlu0 0
  %81 = vperm.xlu0 %80, %v47
  %v82 = vpop.permute.xlu0 %81
  %85 = vset.pattern.permute.xlu0 0
  %86 = vperm.xlu0 %85, %v48
  %v87 = vpop.permute.xlu0 %86
  %90 = vset.pattern.permute.xlu0 0
  %91 = vperm.xlu0 %90, %v49
  %v92 = vpop.permute.xlu0 %91
  %95 = vset.pattern.permute.xlu0 0
  %96 = vperm.xlu0 %95, %v50
  %v97 = vpop.permute.xlu0 %96
  %100 = vset.pattern.permute.xlu0 0
  %101 = vperm.xlu0 %100, %v51
  %v102 = vpop.permute.xlu0 %101
  %105 = vset.pattern.permute.xlu0 0
  %106 = vperm.xlu0 %105, %v52
  %v107 = vpop.permute.xlu0 %106
  %110 = vset.pattern.permute.xlu0 0
  %111 = vperm.xlu0 %110, %v53
  %v112 = vpop.permute.xlu0 %111
  %115 = vset.pattern.permute.xlu0 0
  %116 = vperm.xlu0 %115, %v54
  %v117 = vpop.permute.xlu0 %116
  %120 = vset.pattern.permute.xlu0 0
  %121 = vperm.xlu0 %120, %v55
  %v122 = vpop.permute.xlu0 %121
  %125 = vset.pattern.permute.xlu0 0
  %126 = vperm.xlu0 %125, %v56
  %v127 = vpop.permute.xlu0 %126
  %130 = vset.pattern.permute.xlu0 0
  %131 = vperm.xlu0 %130, %v57
  %v132 = vpop.permute.xlu0 %131
  %135 = vset.pattern.permute.xlu0 0
  %136 = vperm.xlu0 %135, %v58
  %v137 = vpop.permute.xlu0 %136
  %v155 = vunpack.c.l.b16 %v27
  %v156 = vunpack.c.l.b16 %v28
  %v157 = vunpack.c.l.b16 %v29
  %v158 = vunpack.c.l.b16 %v30
  %v159 = vunpack.c.l.b16 %v31
  %v160 = vunpack.c.l.b16 %v32
  %v161 = vunpack.c.l.b16 %v33
  %v162 = vunpack.c.l.b16 %v34
  %v163 = vunpack.c.l.b16 %v35
  %v164 = vunpack.c.l.b16 %v36
  %v165 = vunpack.c.l.b16 %v37
  %v166 = vunpack.c.l.b16 %v38
  %v167 = vunpack.c.l.b16 %v39
  %v168 = vunpack.c.l.b16 %v40
  %v169 = vunpack.c.l.b16 %v41
  %v170 = vunpack.c.l.b16 %v42
  %v171 = vpack.c.b16 %v156, %v155
  %v172 = vpack.c.b16 %v158, %v157
  %v173 = vpack.c.b16 %v160, %v159
  %v174 = vpack.c.b16 %v162, %v161
  %v175 = vpack.c.b16 %v164, %v163
  %v176 = vpack.c.b16 %v166, %v165
  %v177 = vpack.c.b16 %v168, %v167
  %v178 = vpack.c.b16 %v170, %v169
  %v183 = vunpack.c.l.b16 %v23
  %v184 = vunpack.c.h.b16 %v23
  %v185 = vunpack.c.l.b16 %v24
  %v186 = vunpack.c.h.b16 %v24
  %v187 = vunpack.c.l.b16 %v25
  %v188 = vunpack.c.h.b16 %v25
  %v189 = vunpack.c.l.b16 %v26
  %v190 = vunpack.c.h.b16 %v26
  %v191 = vpack.c.b16 %v187, %v183
  %v192 = vpack.c.b16 %v188, %v184
  %v193 = vpack.c.b16 %v189, %v185
  %v194 = vpack.c.b16 %v190, %v186
  %vm199 = vcmask 130048
  %v201 = vsel %vm199, %v171, 0
  %v204 = vsel %vm199, %v172, 0
  %v207 = vsel %vm199, %v173, 0
  %v210 = vsel %vm199, %v174, 0
  %v213 = vsel %vm199, %v175, 0
  %v216 = vsel %vm199, %v176, 0
  %v219 = vsel %vm199, %v177, 0
  %v222 = vsel %vm199, %v178, 0
  %224 = vmatprep.subr.bf16.mxu0 %v192
  %225 = vmatpush1.bf16.msra.mxu0 %v191
  %226 = vmatprep.subr.bf16.mxu0 0
  %227 = vmatpush1.bf16.msra.mxu0 0
  %228 = vmatprep.subr.bf16.mxu0 0
  %229 = vmatpush1.bf16.msra.mxu0 0
  %230 = vmatprep.subr.bf16.mxu0 0
  %231 = vmatpush1.bf16.msra.mxu0 0
  %232 = vmatprep.subr.bf16.mxu0 0
  %233 = vmatpush1.bf16.msra.mxu0 0
  %234 = vmatprep.subr.bf16.mxu0 0
  %235 = vmatpush1.bf16.msra.mxu0 0
  %236 = vmatprep.subr.bf16.mxu0 0
  %237 = vmatpush1.bf16.msra.mxu0 0
  %238 = vmatprep.subr.bf16.mxu0 0
  %239 = vmatpush1.bf16.msra.mxu0 0
  %240 = vmatprep.subr.bf16.mxu0 0
  %241 = vmatpush1.bf16.msra.mxu0 0
  %242 = vmatprep.subr.bf16.mxu0 0
  %243 = vmatpush1.bf16.msra.mxu0 0
  %244 = vmatprep.subr.bf16.mxu0 0
  %245 = vmatpush1.bf16.msra.mxu0 0
  %246 = vmatprep.subr.bf16.mxu0 0
  %247 = vmatpush1.bf16.msra.mxu0 0
  %248 = vmatprep.subr.bf16.mxu0 0
  %249 = vmatpush1.bf16.msra.mxu0 0
  %250 = vmatprep.subr.bf16.mxu0 0
  %251 = vmatpush1.bf16.msra.mxu0 0
  %252 = vmatprep.subr.bf16.mxu0 0
  %253 = vmatpush1.bf16.msra.mxu0 0
  %254 = vmatprep.subr.bf16.mxu0 0
  %255 = vmatpush1.bf16.msra.mxu0 0
  %256 = vmatprep.mubr.bf16.mxu0 0
  %257 = vmatmul.mubr.bf16.gmra.mrb[0].mxu0 %v201
  %v258 = vpop.f32.mrb[0].mxu0
  %v259 = vadd.f32 %v62, %v258
  %v260 = vpop.f32.mrb[0].mxu0
  %v261 = vadd.f32 %v62, %v260
  %v262 = vpop.f32.mrb[0].mxu0
  %v263 = vadd.f32 %v67, %v262
  %v264 = vpop.f32.mrb[0].mxu0
  %v265 = vadd.f32 %v67, %v264
  %266 = vmatprep.mubr.bf16.mxu0 0
  %267 = vmatmul.mubr.bf16.gmra.mrb[0].mxu0 %v204
  %v268 = vpop.f32.mrb[0].mxu0
  %v269 = vadd.f32 %v72, %v268
  %v270 = vpop.f32.mrb[0].mxu0
  %v271 = vadd.f32 %v72, %v270
  %v272 = vpop.f32.mrb[0].mxu0
  %v273 = vadd.f32 %v77, %v272
  %v274 = vpop.f32.mrb[0].mxu0
  %v275 = vadd.f32 %v77, %v274
  %276 = vmatprep.mubr.bf16.mxu0 0
  %277 = vmatmul.mubr.bf16.gmra.mrb[0].mxu0 %v207
  %v278 = vpop.f32.mrb[0].mxu0
  %v279 = vadd.f32 %v82, %v278
  %v280 = vpop.f32.mrb[0].mxu0
  %v281 = vadd.f32 %v82, %v280
  %v282 = vpop.f32.mrb[0].mxu0
  %v283 = vadd.f32 %v87, %v282
  %v284 = vpop.f32.mrb[0].mxu0
  %v285 = vadd.f32 %v87, %v284
  %286 = vmatprep.mubr.bf16.mxu0 0
  %287 = vmatmul.mubr.bf16.gmra.mrb[0].mxu0 %v210
  %v288 = vpop.f32.mrb[0].mxu0
  %v289 = vadd.f32 %v92, %v288
  %v290 = vpop.f32.mrb[0].mxu0
  %v291 = vadd.f32 %v92, %v290
  %v292 = vpop.f32.mrb[0].mxu0
  %v293 = vadd.f32 %v97, %v292
  %v294 = vpop.f32.mrb[0].mxu0
  %v295 = vadd.f32 %v97, %v294
  %296 = vmatprep.mubr.bf16.mxu0 0
  %297 = vmatmul.mubr.bf16.gmra.mrb[0].mxu0 %v213
  %v298 = vpop.f32.mrb[0].mxu0
  %v299 = vadd.f32 %v102, %v298
  %v300 = vpop.f32.mrb[0].mxu0
  %v301 = vadd.f32 %v102, %v300
  %v302 = vpop.f32.mrb[0].mxu0
  %v303 = vadd.f32 %v107, %v302
  %v304 = vpop.f32.mrb[0].mxu0
  %v305 = vadd.f32 %v107, %v304
  %306 = vmatprep.mubr.bf16.mxu0 0
  %307 = vmatmul.mubr.bf16.gmra.mrb[0].mxu0 %v216
  %v308 = vpop.f32.mrb[0].mxu0
  %v309 = vadd.f32 %v112, %v308
  %v310 = vpop.f32.mrb[0].mxu0
  %v311 = vadd.f32 %v112, %v310
  %v312 = vpop.f32.mrb[0].mxu0
  %v313 = vadd.f32 %v117, %v312
  %v314 = vpop.f32.mrb[0].mxu0
  %v315 = vadd.f32 %v117, %v314
  %316 = vmatprep.mubr.bf16.mxu0 0
  %317 = vmatmul.mubr.bf16.gmra.mrb[0].mxu0 %v219
  %v318 = vpop.f32.mrb[0].mxu0
  %v319 = vadd.f32 %v122, %v318
  %v320 = vpop.f32.mrb[0].mxu0
  %v321 = vadd.f32 %v122, %v320
  %v322 = vpop.f32.mrb[0].mxu0
  %v323 = vadd.f32 %v127, %v322
  %v324 = vpop.f32.mrb[0].mxu0
  %v325 = vadd.f32 %v127, %v324
  %326 = vmatprep.mubr.bf16.mxu0 0
  %327 = vmatmul.mubr.bf16.gmra.mrb[0].mxu0 %v222
  %v328 = vpop.f32.mrb[0].mxu0
  %v329 = vadd.f32 %v132, %v328
  %v330 = vpop.f32.mrb[0].mxu0
  %v331 = vadd.f32 %v132, %v330
  %v332 = vpop.f32.mrb[0].mxu0
  %v333 = vadd.f32 %v137, %v332
  %v334 = vpop.f32.mrb[0].mxu0
  %v335 = vadd.f32 %v137, %v334
  %336 = vdwg.mxu0
  %337 = vmatprep.subr.bf16.mxu0 %v194
  %338 = vmatpush1.bf16.msra.mxu0 %v193
  %339 = vmatprep.subr.bf16.mxu0 0
  %340 = vmatpush1.bf16.msra.mxu0 0
  %341 = vmatprep.subr.bf16.mxu0 0
  %342 = vmatpush1.bf16.msra.mxu0 0
  %343 = vmatprep.subr.bf16.mxu0 0
  %344 = vmatpush1.bf16.msra.mxu0 0
  %345 = vmatprep.subr.bf16.mxu0 0
  %346 = vmatpush1.bf16.msra.mxu0 0
  %347 = vmatprep.subr.bf16.mxu0 0
  %348 = vmatpush1.bf16.msra.mxu0 0
  %349 = vmatprep.subr.bf16.mxu0 0
  %350 = vmatpush1.bf16.msra.mxu0 0
  %351 = vmatprep.subr.bf16.mxu0 0
  %352 = vmatpush1.bf16.msra.mxu0 0
  %353 = vmatprep.subr.bf16.mxu0 0
  %354 = vmatpush1.bf16.msra.mxu0 0
  %355 = vmatprep.subr.bf16.mxu0 0
  %356 = vmatpush1.bf16.msra.mxu0 0
  %357 = vmatprep.subr.bf16.mxu0 0
  %358 = vmatpush1.bf16.msra.mxu0 0
  %359 = vmatprep.subr.bf16.mxu0 0
  %360 = vmatpush1.bf16.msra.mxu0 0
  %361 = vmatprep.subr.bf16.mxu0 0
  %362 = vmatpush1.bf16.msra.mxu0 0
  %363 = vmatprep.subr.bf16.mxu0 0
  %364 = vmatpush1.bf16.msra.mxu0 0
  %365 = vmatprep.subr.bf16.mxu0 0
  %366 = vmatpush1.bf16.msra.mxu0 0
  %367 = vmatprep.subr.bf16.mxu0 0
  %368 = vmatpush1.bf16.msra.mxu0 0
  %369 = vmatprep.mubr.bf16.mxu0 0
  %370 = vmatmul.mubr.bf16.gmra.mrb[0].mxu0 %v201
  %v371 = vpop.f32.mrb[0].mxu0
  %v372 = vadd.f32 %v62, %v371
  %v373 = vpop.f32.mrb[0].mxu0
  %v374 = vadd.f32 %v62, %v373
  %v375 = vpop.f32.mrb[0].mxu0
  %v376 = vadd.f32 %v67, %v375
  %v377 = vpop.f32.mrb[0].mxu0
  %v378 = vadd.f32 %v67, %v377
  %379 = vmatprep.mubr.bf16.mxu0 0
  %380 = vmatmul.mubr.bf16.gmra.mrb[0].mxu0 %v204
  %v381 = vpop.f32.mrb[0].mxu0
  %v382 = vadd.f32 %v72, %v381
  %v383 = vpop.f32.mrb[0].mxu0
  %v384 = vadd.f32 %v72, %v383
  %v385 = vpop.f32.mrb[0].mxu0
  %v386 = vadd.f32 %v77, %v385
  %v387 = vpop.f32.mrb[0].mxu0
  %v388 = vadd.f32 %v77, %v387
  %389 = vmatprep.mubr.bf16.mxu0 0
  %390 = vmatmul.mubr.bf16.gmra.mrb[0].mxu0 %v207
  %v391 = vpop.f32.mrb[0].mxu0
  %v392 = vadd.f32 %v82, %v391
  %v393 = vpop.f32.mrb[0].mxu0
  %v394 = vadd.f32 %v82, %v393
  %v395 = vpop.f32.mrb[0].mxu0
  %v396 = vadd.f32 %v87, %v395
  %v397 = vpop.f32.mrb[0].mxu0
  %v398 = vadd.f32 %v87, %v397
  %399 = vmatprep.mubr.bf16.mxu0 0
  %400 = vmatmul.mubr.bf16.gmra.mrb[0].mxu0 %v210
  %v401 = vpop.f32.mrb[0].mxu0
  %v402 = vadd.f32 %v92, %v401
  %v403 = vpop.f32.mrb[0].mxu0
  %v404 = vadd.f32 %v92, %v403
  %v405 = vpop.f32.mrb[0].mxu0
  %v406 = vadd.f32 %v97, %v405
  %v407 = vpop.f32.mrb[0].mxu0
  %v408 = vadd.f32 %v97, %v407
  %409 = vmatprep.mubr.bf16.mxu0 0
  %410 = vmatmul.mubr.bf16.gmra.mrb[0].mxu0 %v213
  %v411 = vpop.f32.mrb[0].mxu0
  %v412 = vadd.f32 %v102, %v411
  %v413 = vpop.f32.mrb[0].mxu0
  %v414 = vadd.f32 %v102, %v413
  %v415 = vpop.f32.mrb[0].mxu0
  %v416 = vadd.f32 %v107, %v415
  %v417 = vpop.f32.mrb[0].mxu0
  %v418 = vadd.f32 %v107, %v417
  %419 = vmatprep.mubr.bf16.mxu0 0
  %420 = vmatmul.mubr.bf16.gmra.mrb[0].mxu0 %v216
  %v421 = vpop.f32.mrb[0].mxu0
  %v422 = vadd.f32 %v112, %v421
  %v423 = vpop.f32.mrb[0].mxu0
  %v424 = vadd.f32 %v112, %v423
  %v425 = vpop.f32.mrb[0].mxu0
  %v426 = vadd.f32 %v117, %v425
  %v427 = vpop.f32.mrb[0].mxu0
  %v428 = vadd.f32 %v117, %v427
  %429 = vmatprep.mubr.bf16.mxu0 0
  %430 = vmatmul.mubr.bf16.gmra.mrb[0].mxu0 %v219
  %v431 = vpop.f32.mrb[0].mxu0
  %v432 = vadd.f32 %v122, %v431
  %v433 = vpop.f32.mrb[0].mxu0
  %v434 = vadd.f32 %v122, %v433
  %v435 = vpop.f32.mrb[0].mxu0
  %v436 = vadd.f32 %v127, %v435
  %v437 = vpop.f32.mrb[0].mxu0
  %v438 = vadd.f32 %v127, %v437
  %439 = vmatprep.mubr.bf16.mxu0 0
  %440 = vmatmul.mubr.bf16.gmra.mrb[0].mxu0 %v222
  %v441 = vpop.f32.mrb[0].mxu0
  %v442 = vadd.f32 %v132, %v441
  %v443 = vpop.f32.mrb[0].mxu0
  %v444 = vadd.f32 %v132, %v443
  %v445 = vpop.f32.mrb[0].mxu0
  %v446 = vadd.f32 %v137, %v445
  %v447 = vpop.f32.mrb[0].mxu0
  %v448 = vadd.f32 %v137, %v447
  %449 = vdwg.mxu0
  %v450 = vmul.f32 %v259, 0.5
  %v451 = vmul.f32 %v261, 0.5
  %v452 = vmul.f32 %v372, 0.5
  %v453 = vmul.f32 %v374, 0.5
  %v454 = vmul.f32 %v263, 0.5
  %v455 = vmul.f32 %v265, 0.5
  %v456 = vmul.f32 %v376, 0.5
  %v457 = vmul.f32 %v378, 0.5
  %v458 = vmul.f32 %v269, 0.5
  %v459 = vmul.f32 %v271, 0.5
  %v460 = vmul.f32 %v382, 0.5
  %v461 = vmul.f32 %v384, 0.5
  %v462 = vmul.f32 %v273, 0.5
  %v463 = vmul.f32 %v275, 0.5
  %v464 = vmul.f32 %v386, 0.5
  %v465 = vmul.f32 %v388, 0.5
  %v466 = vmul.f32 %v279, 0.5
  %v467 = vmul.f32 %v281, 0.5
  %v468 = vmul.f32 %v392, 0.5
  %v469 = vmul.f32 %v394, 0.5
  %v470 = vmul.f32 %v283, 0.5
  %v471 = vmul.f32 %v285, 0.5
  %v472 = vmul.f32 %v396, 0.5
  %v473 = vmul.f32 %v398, 0.5
  %v474 = vmul.f32 %v289, 0.5
  %v475 = vmul.f32 %v291, 0.5
  %v476 = vmul.f32 %v402, 0.5
  %v477 = vmul.f32 %v404, 0.5
  %v478 = vmul.f32 %v293, 0.5
  %v479 = vmul.f32 %v295, 0.5
  %v480 = vmul.f32 %v406, 0.5
  %v481 = vmul.f32 %v408, 0.5
  %v482 = vmul.f32 %v299, 0.5
  %v483 = vmul.f32 %v301, 0.5
  %v484 = vmul.f32 %v412, 0.5
  %v485 = vmul.f32 %v414, 0.5
  %v486 = vmul.f32 %v303, 0.5
  %v487 = vmul.f32 %v305, 0.5
  %v488 = vmul.f32 %v416, 0.5
  %v489 = vmul.f32 %v418, 0.5
  %v490 = vmul.f32 %v309, 0.5
  %v491 = vmul.f32 %v311, 0.5
  %v492 = vmul.f32 %v422, 0.5
  %v493 = vmul.f32 %v424, 0.5
  %v494 = vmul.f32 %v313, 0.5
  %v495 = vmul.f32 %v315, 0.5
  %v496 = vmul.f32 %v426, 0.5
  %v497 = vmul.f32 %v428, 0.5
  %v498 = vmul.f32 %v319, 0.5
  %v499 = vmul.f32 %v321, 0.5
  %v500 = vmul.f32 %v432, 0.5
  %v501 = vmul.f32 %v434, 0.5
  %v502 = vmul.f32 %v323, 0.5
  %v503 = vmul.f32 %v325, 0.5
  %v504 = vmul.f32 %v436, 0.5
  %v505 = vmul.f32 %v438, 0.5
  %v506 = vmul.f32 %v329, 0.5
  %v507 = vmul.f32 %v331, 0.5
  %v508 = vmul.f32 %v442, 0.5
  %v509 = vmul.f32 %v444, 0.5
  %v510 = vmul.f32 %v333, 0.5
  %v511 = vmul.f32 %v335, 0.5
  %v512 = vmul.f32 %v446, 0.5
  %v513 = vmul.f32 %v448, 0.5
  %v514 = vmul.f32 %v259, 0.70710677
  %v515 = vmul.f32 %v261, 0.70710677
  %v516 = vmul.f32 %v372, 0.70710677
  %v517 = vmul.f32 %v374, 0.70710677
  %v518 = vmul.f32 %v263, 0.70710677
  %v519 = vmul.f32 %v265, 0.70710677
  %v520 = vmul.f32 %v376, 0.70710677
  %v521 = vmul.f32 %v378, 0.70710677
  %v522 = vmul.f32 %v269, 0.70710677
  %v523 = vmul.f32 %v271, 0.70710677
  %v524 = vmul.f32 %v382, 0.70710677
  %v525 = vmul.f32 %v384, 0.70710677
  %v526 = vmul.f32 %v273, 0.70710677
  %v527 = vmul.f32 %v275, 0.70710677
  %v528 = vmul.f32 %v386, 0.70710677
  %v529 = vmul.f32 %v388, 0.70710677
  %v530 = vmul.f32 %v279, 0.70710677
  %v531 = vmul.f32 %v281, 0.70710677
  %v532 = vmul.f32 %v392, 0.70710677
  %v533 = vmul.f32 %v394, 0.70710677
  %v534 = vmul.f32 %v283, 0.70710677
  %v535 = vmul.f32 %v285, 0.70710677
  %v536 = vmul.f32 %v396, 0.70710677
  %v537 = vmul.f32 %v398, 0.70710677
  %v538 = vmul.f32 %v289, 0.70710677
  %v539 = vmul.f32 %v291, 0.70710677
  %v540 = vmul.f32 %v402, 0.70710677
  %v541 = vmul.f32 %v404, 0.70710677
  %v542 = vmul.f32 %v293, 0.70710677
  %v543 = vmul.f32 %v295, 0.70710677
  %v544 = vmul.f32 %v406, 0.70710677
  %v545 = vmul.f32 %v408, 0.70710677
  %v546 = vmul.f32 %v299, 0.70710677
  %v547 = vmul.f32 %v301, 0.70710677
  %v548 = vmul.f32 %v412, 0.70710677
  %v549 = vmul.f32 %v414, 0.70710677
  %v550 = vmul.f32 %v303, 0.70710677
  %v551 = vmul.f32 %v305, 0.70710677
  %v552 = vmul.f32 %v416, 0.70710677
  %v553 = vmul.f32 %v418, 0.70710677
  %v554 = vmul.f32 %v309, 0.70710677
  %v555 = vmul.f32 %v311, 0.70710677
  %v556 = vmul.f32 %v422, 0.70710677
  %v557 = vmul.f32 %v424, 0.70710677
  %v558 = vmul.f32 %v313, 0.70710677
  %v559 = vmul.f32 %v315, 0.70710677
  %v560 = vmul.f32 %v426, 0.70710677
  %v561 = vmul.f32 %v428, 0.70710677
  %v562 = vmul.f32 %v319, 0.70710677
  %v563 = vmul.f32 %v321, 0.70710677
  %v564 = vmul.f32 %v432, 0.70710677
  %v565 = vmul.f32 %v434, 0.70710677
  %v566 = vmul.f32 %v323, 0.70710677
  %v567 = vmul.f32 %v325, 0.70710677
  %v568 = vmul.f32 %v436, 0.70710677
  %v569 = vmul.f32 %v438, 0.70710677
  %v570 = vmul.f32 %v329, 0.70710677
  %v571 = vmul.f32 %v331, 0.70710677
  %v572 = vmul.f32 %v442, 0.70710677
  %v573 = vmul.f32 %v444, 0.70710677
  %v574 = vmul.f32 %v333, 0.70710677
  %v575 = vmul.f32 %v335, 0.70710677
  %v576 = vmul.f32 %v446, 0.70710677
  %v577 = vmul.f32 %v448, 0.70710677
  %v578 = verf.f32.pop %v514
  %v579 = verf.f32.pop %v515
  %v580 = verf.f32.pop %v516
  %v581 = verf.f32.pop %v517
  %v582 = verf.f32.pop %v518
  %v583 = verf.f32.pop %v519
  %v584 = verf.f32.pop %v520
  %v585 = verf.f32.pop %v521
  %v586 = verf.f32.pop %v522
  %v587 = verf.f32.pop %v523
  %v588 = verf.f32.pop %v524
  %v589 = verf.f32.pop %v525
  %v590 = verf.f32.pop %v526
  %v591 = verf.f32.pop %v527
  %v592 = verf.f32.pop %v528
  %v593 = verf.f32.pop %v529
  %v594 = verf.f32.pop %v530
  %v595 = verf.f32.pop %v531
  %v596 = verf.f32.pop %v532
  %v597 = verf.f32.pop %v533
  %v598 = verf.f32.pop %v534
  %v599 = verf.f32.pop %v535
  %v600 = verf.f32.pop %v536
  %v601 = verf.f32.pop %v537
  %v602 = verf.f32.pop %v538
  %v603 = verf.f32.pop %v539
  %v604 = verf.f32.pop %v540
  %v605 = verf.f32.pop %v541
  %v606 = verf.f32.pop %v542
  %v607 = verf.f32.pop %v543
  %v608 = verf.f32.pop %v544
  %v609 = verf.f32.pop %v545
  %v610 = verf.f32.pop %v546
  %v611 = verf.f32.pop %v547
  %v612 = verf.f32.pop %v548
  %v613 = verf.f32.pop %v549
  %v614 = verf.f32.pop %v550
  %v615 = verf.f32.pop %v551
  %v616 = verf.f32.pop %v552
  %v617 = verf.f32.pop %v553
  %v618 = verf.f32.pop %v554
  %v619 = verf.f32.pop %v555
  %v620 = verf.f32.pop %v556
  %v621 = verf.f32.pop %v557
  %v622 = verf.f32.pop %v558
  %v623 = verf.f32.pop %v559
  %v624 = verf.f32.pop %v560
  %v625 = verf.f32.pop %v561
  %v626 = verf.f32.pop %v562
  %v627 = verf.f32.pop %v563
  %v628 = verf.f32.pop %v564
  %v629 = verf.f32.pop %v565
  %v630 = verf.f32.pop %v566
  %v631 = verf.f32.pop %v567
  %v632 = verf.f32.pop %v568
  %v633 = verf.f32.pop %v569
  %v634 = verf.f32.pop %v570
  %v635 = verf.f32.pop %v571
  %v636 = verf.f32.pop %v572
  %v637 = verf.f32.pop %v573
  %v638 = verf.f32.pop %v574
  %v639 = verf.f32.pop %v575
  %v640 = verf.f32.pop %v576
  %v641 = verf.f32.pop %v577
  %v642 = vadd.f32 %v578, 1.0
  %v643 = vadd.f32 %v579, 1.0
  %v644 = vadd.f32 %v580, 1.0
  %v645 = vadd.f32 %v581, 1.0
  %v646 = vadd.f32 %v582, 1.0
  %v647 = vadd.f32 %v583, 1.0
  %v648 = vadd.f32 %v584, 1.0
  %v649 = vadd.f32 %v585, 1.0
  %v650 = vadd.f32 %v586, 1.0
  %v651 = vadd.f32 %v587, 1.0
  %v652 = vadd.f32 %v588, 1.0
  %v653 = vadd.f32 %v589, 1.0
  %v654 = vadd.f32 %v590, 1.0
  %v655 = vadd.f32 %v591, 1.0
  %v656 = vadd.f32 %v592, 1.0
  %v657 = vadd.f32 %v593, 1.0
  %v658 = vadd.f32 %v594, 1.0
  %v659 = vadd.f32 %v595, 1.0
  %v660 = vadd.f32 %v596, 1.0
  %v661 = vadd.f32 %v597, 1.0
  %v662 = vadd.f32 %v598, 1.0
  %v663 = vadd.f32 %v599, 1.0
  %v664 = vadd.f32 %v600, 1.0
  %v665 = vadd.f32 %v601, 1.0
  %v666 = vadd.f32 %v602, 1.0
  %v667 = vadd.f32 %v603, 1.0
  %v668 = vadd.f32 %v604, 1.0
  %v669 = vadd.f32 %v605, 1.0
  %v670 = vadd.f32 %v606, 1.0
  %v671 = vadd.f32 %v607, 1.0
  %v672 = vadd.f32 %v608, 1.0
  %v673 = vadd.f32 %v609, 1.0
  %v674 = vadd.f32 %v610, 1.0
  %v675 = vadd.f32 %v611, 1.0
  %v676 = vadd.f32 %v612, 1.0
  %v677 = vadd.f32 %v613, 1.0
  %v678 = vadd.f32 %v614, 1.0
  %v679 = vadd.f32 %v615, 1.0
  %v680 = vadd.f32 %v616, 1.0
  %v681 = vadd.f32 %v617, 1.0
  %v682 = vadd.f32 %v618, 1.0
  %v683 = vadd.f32 %v619, 1.0
  %v684 = vadd.f32 %v620, 1.0
  %v685 = vadd.f32 %v621, 1.0
  %v686 = vadd.f32 %v622, 1.0
  %v687 = vadd.f32 %v623, 1.0
  %v688 = vadd.f32 %v624, 1.0
  %v689 = vadd.f32 %v625, 1.0
  %v690 = vadd.f32 %v626, 1.0
  %v691 = vadd.f32 %v627, 1.0
  %v692 = vadd.f32 %v628, 1.0
  %v693 = vadd.f32 %v629, 1.0
  %v694 = vadd.f32 %v630, 1.0
  %v695 = vadd.f32 %v631, 1.0
  %v696 = vadd.f32 %v632, 1.0
  %v697 = vadd.f32 %v633, 1.0
  %v698 = vadd.f32 %v634, 1.0
  %v699 = vadd.f32 %v635, 1.0
  %v700 = vadd.f32 %v636, 1.0
  %v701 = vadd.f32 %v637, 1.0
  %v702 = vadd.f32 %v638, 1.0
  %v703 = vadd.f32 %v639, 1.0
  %v704 = vadd.f32 %v640, 1.0
  %v705 = vadd.f32 %v641, 1.0
  %v706 = vmul.f32 %v450, %v642
  %v707 = vmul.f32 %v451, %v643
  %v708 = vmul.f32 %v452, %v644
  %v709 = vmul.f32 %v453, %v645
  %v710 = vmul.f32 %v454, %v646
  %v711 = vmul.f32 %v455, %v647
  %v712 = vmul.f32 %v456, %v648
  %v713 = vmul.f32 %v457, %v649
  %v714 = vmul.f32 %v458, %v650
  %v715 = vmul.f32 %v459, %v651
  %v716 = vmul.f32 %v460, %v652
  %v717 = vmul.f32 %v461, %v653
  %v718 = vmul.f32 %v462, %v654
  %v719 = vmul.f32 %v463, %v655
  %v720 = vmul.f32 %v464, %v656
  %v721 = vmul.f32 %v465, %v657
  %v722 = vmul.f32 %v466, %v658
  %v723 = vmul.f32 %v467, %v659
  %v724 = vmul.f32 %v468, %v660
  %v725 = vmul.f32 %v469, %v661
  %v726 = vmul.f32 %v470, %v662
  %v727 = vmul.f32 %v471, %v663
  %v728 = vmul.f32 %v472, %v664
  %v729 = vmul.f32 %v473, %v665
  %v730 = vmul.f32 %v474, %v666
  %v731 = vmul.f32 %v475, %v667
  %v732 = vmul.f32 %v476, %v668
  %v733 = vmul.f32 %v477, %v669
  %v734 = vmul.f32 %v478, %v670
  %v735 = vmul.f32 %v479, %v671
  %v736 = vmul.f32 %v480, %v672
  %v737 = vmul.f32 %v481, %v673
  %v738 = vmul.f32 %v482, %v674
  %v739 = vmul.f32 %v483, %v675
  %v740 = vmul.f32 %v484, %v676
  %v741 = vmul.f32 %v485, %v677
  %v742 = vmul.f32 %v486, %v678
  %v743 = vmul.f32 %v487, %v679
  %v744 = vmul.f32 %v488, %v680
  %v745 = vmul.f32 %v489, %v681
  %v746 = vmul.f32 %v490, %v682
  %v747 = vmul.f32 %v491, %v683
  %v748 = vmul.f32 %v492, %v684
  %v749 = vmul.f32 %v493, %v685
  %v750 = vmul.f32 %v494, %v686
  %v751 = vmul.f32 %v495, %v687
  %v752 = vmul.f32 %v496, %v688
  %v753 = vmul.f32 %v497, %v689
  %v754 = vmul.f32 %v498, %v690
  %v755 = vmul.f32 %v499, %v691
  %v756 = vmul.f32 %v500, %v692
  %v757 = vmul.f32 %v501, %v693
  %v758 = vmul.f32 %v502, %v694
  %v759 = vmul.f32 %v503, %v695
  %v760 = vmul.f32 %v504, %v696
  %v761 = vmul.f32 %v505, %v697
  %v762 = vmul.f32 %v506, %v698
  %v763 = vmul.f32 %v507, %v699
  %v764 = vmul.f32 %v508, %v700
  %v765 = vmul.f32 %v509, %v701
  %v766 = vmul.f32 %v510, %v702
  %v767 = vmul.f32 %v511, %v703
  %v768 = vmul.f32 %v512, %v704
  %v769 = vmul.f32 %v513, %v705
  %v770 = vld [vmem:[%s3] sm:$0x1]
  %v771 = vpack.c.bf16 %v710, %v706
  %v772 = vpack.c.bf16 %v711, %v707
  %v773 = vpack.c.bf16 %v712, %v708
  %v774 = vpack.c.bf16 %v713, %v709
  %v775 = vpack.c.bf16 %v718, %v714
  %v776 = vpack.c.bf16 %v719, %v715
  %v777 = vpack.c.bf16 %v720, %v716
  %v778 = vpack.c.bf16 %v721, %v717
  %v779 = vpack.c.bf16 %v726, %v722
  %v780 = vpack.c.bf16 %v727, %v723
  %v781 = vpack.c.bf16 %v728, %v724
  %v782 = vpack.c.bf16 %v729, %v725
  %v783 = vpack.c.bf16 %v734, %v730
  %v784 = vpack.c.bf16 %v735, %v731
  %v785 = vpack.c.bf16 %v736, %v732
  %v786 = vpack.c.bf16 %v737, %v733
  %v787 = vpack.c.bf16 %v742, %v738
  %v788 = vpack.c.bf16 %v743, %v739
  %v789 = vpack.c.bf16 %v744, %v740
  %v790 = vpack.c.bf16 %v745, %v741
  %v791 = vpack.c.bf16 %v750, %v746
  %v792 = vpack.c.bf16 %v751, %v747
  %v793 = vpack.c.bf16 %v752, %v748
  %v794 = vpack.c.bf16 %v753, %v749
  %v795 = vpack.c.bf16 %v758, %v754
  %v796 = vpack.c.bf16 %v759, %v755
  %v797 = vpack.c.bf16 %v760, %v756
  %v798 = vpack.c.bf16 %v761, %v757
  %v799 = vpack.c.bf16 %v766, %v762
  %v800 = vpack.c.bf16 %v767, %v763
  %v801 = vpack.c.bf16 %v768, %v764
  %v802 = vpack.c.bf16 %v769, %v765
  %v803 = vld [vmem:[#allocation2] sm:$0x1]
  %805 = vset.pattern.permute.xlu0 0
  %806 = vperm.xlu0 %805, %v803
  %v807 = vpop.permute.xlu0 %806
  %v809 = vlaneseq
  %v810 = vshrl.u32 %v809, 7
  %v811 = vsub.s32 0, %v810
  %v812 = vrot.slane %v807, %v811
  %813 = vmatprep.subr.bf16.mxu0 %v772
  %814 = vmatpush1.bf16.msra.mxu0 %v771
  %815 = vmatprep.subr.bf16.mxu0 %v776
  %816 = vmatpush1.bf16.msra.mxu0 %v775
  %817 = vmatprep.subr.bf16.mxu0 %v780
  %818 = vmatpush1.bf16.msra.mxu0 %v779
  %819 = vmatprep.subr.bf16.mxu0 %v784
  %820 = vmatpush1.bf16.msra.mxu0 %v783
  %821 = vmatprep.subr.bf16.mxu0 %v788
  %822 = vmatpush1.bf16.msra.mxu0 %v787
  %823 = vmatprep.subr.bf16.mxu0 %v792
  %824 = vmatpush1.bf16.msra.mxu0 %v791
  %825 = vmatprep.subr.bf16.mxu0 %v796
  %826 = vmatpush1.bf16.msra.mxu0 %v795
  %827 = vmatprep.subr.bf16.mxu0 %v800
  %828 = vmatpush1.bf16.msra.mxu0 %v799
  %829 = vmatprep.subr.bf16.mxu0 0
  %830 = vmatpush1.bf16.msra.mxu0 0
  %831 = vmatprep.subr.bf16.mxu0 0
  %832 = vmatpush1.bf16.msra.mxu0 0
  %833 = vmatprep.subr.bf16.mxu0 0
  %834 = vmatpush1.bf16.msra.mxu0 0
  %835 = vmatprep.subr.bf16.mxu0 0
  %836 = vmatpush1.bf16.msra.mxu0 0
  %837 = vmatprep.subr.bf16.mxu0 0
  %838 = vmatpush1.bf16.msra.mxu0 0
  %839 = vmatprep.subr.bf16.mxu0 0
  %840 = vmatpush1.bf16.msra.mxu0 0
  %841 = vmatprep.subr.bf16.mxu0 0
  %842 = vmatpush1.bf16.msra.mxu0 0
  %843 = vmatprep.subr.bf16.mxu0 0
  %844 = vmatpush1.bf16.msra.mxu0 0
  %845 = vmatprep.mubr.bf16.mxu0 0
  %846 = vmatmul.mubr.bf16.gmra.mrb[0].mxu0 %v770
  %v847 = vpop.f32.mrb[0].mxu0
  %v848 = vadd.f32 %v812, %v847
  %v849 = vpop.f32.mrb[0].mxu0
  %v850 = vadd.f32 %v812, %v849
  %v851 = vpop.f32.mrb[0].mxu0
  %v852 = vpop.f32.mrb[0].mxu0
  %853 = vdwg.mxu0
  %854 = vmatprep.subr.bf16.mxu0 %v774
  %855 = vmatpush1.bf16.msra.mxu0 %v773
  %856 = vmatprep.subr.bf16.mxu0 %v778
  %857 = vmatpush1.bf16.msra.mxu0 %v777
  %858 = vmatprep.subr.bf16.mxu0 %v782
  %859 = vmatpush1.bf16.msra.mxu0 %v781
  %860 = vmatprep.subr.bf16.mxu0 %v786
  %861 = vmatpush1.bf16.msra.mxu0 %v785
  %862 = vmatprep.subr.bf16.mxu0 %v790
  %863 = vmatpush1.bf16.msra.mxu0 %v789
  %864 = vmatprep.subr.bf16.mxu0 %v794
  %865 = vmatpush1.bf16.msra.mxu0 %v793
  %866 = vmatprep.subr.bf16.mxu0 %v798
  %867 = vmatpush1.bf16.msra.mxu0 %v797
  %868 = vmatprep.subr.bf16.mxu0 %v802
  %869 = vmatpush1.bf16.msra.mxu0 %v801
  %870 = vmatprep.subr.bf16.mxu0 0
  %871 = vmatpush1.bf16.msra.mxu0 0
  %872 = vmatprep.subr.bf16.mxu0 0
  %873 = vmatpush1.bf16.msra.mxu0 0
  %874 = vmatprep.subr.bf16.mxu0 0
  %875 = vmatpush1.bf16.msra.mxu0 0
  %876 = vmatprep.subr.bf16.mxu0 0
  %877 = vmatpush1.bf16.msra.mxu0 0
  %878 = vmatprep.subr.bf16.mxu0 0
  %879 = vmatpush1.bf16.msra.mxu0 0
  %880 = vmatprep.subr.bf16.mxu0 0
  %881 = vmatpush1.bf16.msra.mxu0 0
  %882 = vmatprep.subr.bf16.mxu0 0
  %883 = vmatpush1.bf16.msra.mxu0 0
  %884 = vmatprep.subr.bf16.mxu0 0
  %885 = vmatpush1.bf16.msra.mxu0 0
  %886 = vmatprep.mubr.bf16.mxu0 0
  %887 = vmatmul.mubr.bf16.gmra.mrb[0].mxu0 %v770
  %v888 = vpop.f32.mrb[0].mxu0
  %v889 = vadd.f32 %v812, %v888
  %v890 = vpop.f32.mrb[0].mxu0
  %v891 = vadd.f32 %v812, %v890
  %v892 = vpop.f32.mrb[0].mxu0
  %v893 = vpop.f32.mrb[0].mxu0
  %894 = vdwg.mxu0
  %v899 = vcombine.low %v848, %v850
  %v900 = vcombine.low %v889, %v891
  %v902 = vunpack.c.l.s4 1966171168
  %v903 = vunpack.c.0.s8 %v902
  %v904 = vlaneseq
  %v905 = vshrl.u32 %v904, 7
  %v906 = vsub.s32 %v903, %v905
  %v907 = vrot.slane %v899, %v906
  %v909 = vunpack.c.l.s4 1966171168
  %v910 = vunpack.c.0.s8 %v909
  %v911 = vlaneseq
  %v912 = vshrl.u32 %v911, 7
  %v913 = vsub.s32 %v910, %v912
  %v914 = vrot.slane %v900, %v913
  %v915 = vcombine.low %v907, %v914
  %v917 = vunpack.c.l.s4 1966171168
  %v918 = vunpack.c.0.s8 %v917
  %v919 = vlaneseq
  %v920 = vshrl.u32 %v919, 7
  %v921 = vsub.s32 %v918, %v920
  %v922 = vrot.slane %v915, %v921
  %v924 = vlaneseq
  %vm925 = vcmp.ge.s32.totalorder %v924, 0
  %vm926 = vcmp.lt.s32.totalorder %v924, 512
  %vm927 = vmand %vm925, %vm926
  %928 = vst.msk [vmem:[%s5] sm:$0xf] %vm927, %v922
  // Predicated region
  $region22: #{fno2d_forward.19} parent=0 // pred_check
    _
  $region23: #{fno2d_forward.19} parent=0 // pred_check_branch
    %930 = sbr.rel (0) target = $region25
  $region24: #{fno2d_forward.19} parent=0 // pred_region
    _
  $region25: #{fno2d_forward.19} parent=0 // pred_fallthru
    _
  // Predicated region
  $region26: #{fno2d_forward.19} parent=0 // pred_check
    _
  $region27: #{fno2d_forward.19} parent=0 // pred_check_branch
    %932 = sbr.rel (0) target = $region29
  $region28: #{fno2d_forward.19} parent=0 // pred_region
    _
  $region29: #{fno2d_forward.19} parent=0 // pred_fallthru
    _

</llo_original>
